<compile_context>
chip_gen: v6e
topology: v6e:2x2x1
jax: 0.10.0
libtpu: 0.0.40
codegen_flags: <defaults>
</compile_context>

<pallas_src>
import math

import jax
import jax.numpy as jnp
import numpy as np
from jax.experimental import pallas as pl
from jax.experimental.pallas import tpu as pltpu

HIDDEN = 32          # hidden_dim (small, consistent with the module)
NHEADS = 4           # nheads
HEAD_DIM = HIDDEN // NHEADS
FFN_DIM = 4 * HIDDEN
LN_EPS = 1e-5
SQRT_2_OVER_PI = 0.7978845608028654
TOKEN_TARGET = 2048                 # tokens per grid step (review: 2048-8192)
VMEM_FALLBACK = 64 * 1024 * 1024    # v7x per-core VMEM (smallest generation)


# ------------------------- in-kernel math helpers ------------------------- #
def _layernorm(v, w, b):
    mu = jnp.mean(v, axis=-1, keepdims=True)
    var = jnp.mean((v - mu) ** 2, axis=-1, keepdims=True)
    return (v - mu) * jax.lax.rsqrt(var + LN_EPS) * w + b


def _gelu_tanh(v):
    return 0.5 * v * (1.0 + jnp.tanh(SQRT_2_OVER_PI * (v + 0.044715 * v * v * v)))


# --------------------------------- kernel --------------------------------- #
def transformer_layer_kernel(x_ref, kbias_ref, wsq_ref, f2w_ref, f3w_ref,
                             vech_ref, vecf_ref, o_ref):
    TB, S, H = x_ref.shape
    T = TB * S

    x = x_ref[...].reshape(T, H)          # all tokens of this batch tile (T, H)
    kbias = kbias_ref[...]                # (TB, 1, S) additive key-padding bias

    n1w, n1b = vech_ref[0], vech_ref[1]
    n2w, n2b = vech_ref[2], vech_ref[3]
    l3w, l3b = vech_ref[4], vech_ref[5]
    ob, f1b, f3b = vech_ref[6], vech_ref[7], vech_ref[8]
    bq, bk, bv = vech_ref[9], vech_ref[10], vech_ref[11]
    f2b, l4w, l4b = vecf_ref[0], vecf_ref[1], vecf_ref[2]

    # ---- attention block: x = x + out_proj(MHA(norm1(x))) ----
    h = _layernorm(x, n1w, n1b)
    hb = h.astype(jnp.bfloat16)
    # full-width projections (K=N=32); 1/sqrt(head_dim) folded into wq/bq
    q = jnp.dot(hb, wsq_ref[0], preferred_element_type=jnp.float32) + bq
    k = jnp.dot(hb, wsq_ref[1], preferred_element_type=jnp.float32) + bk
    v = jnp.dot(hb, wsq_ref[2], preferred_element_type=jnp.float32) + bv

    def split_heads(t):   # (T, H) -> (NHEADS*TB, S, HEAD_DIM), head-major batch
        cols = [t[:, i * HEAD_DIM:(i + 1) * HEAD_DIM] for i in range(NHEADS)]
        return (jnp.concatenate(cols, axis=0)
                .reshape(NHEADS * TB, S, HEAD_DIM).astype(jnp.bfloat16))

    qh, kh, vh = split_heads(q), split_heads(k), split_heads(v)

    # single batched score einsum over (head, batch-tile): no per-head matmuls
    s = jnp.einsum('bqd,bkd->bqk', qh, kh, preferred_element_type=jnp.float32)
    s = s.reshape(NHEADS, TB, S, S) + kbias          # one key-mask broadcast
    s = s - jnp.max(s, axis=-1, keepdims=True)
    p = jnp.exp(s)
    p = p * pl.reciprocal(jnp.sum(p, axis=-1, keepdims=True), approx=True)
    p = p.reshape(NHEADS * TB, S, S).astype(jnp.bfloat16)
    o = jnp.einsum('bqk,bkd->bqd', p, vh, preferred_element_type=jnp.float32)

    # merge heads back into lanes, then ONE (T,32)@(32,32) output projection
    o = o.reshape(NHEADS * T, HEAD_DIM)
    oc = jnp.concatenate([o[i * T:(i + 1) * T, :] for i in range(NHEADS)],
                         axis=-1)                    # (T, H)
    attn = jnp.dot(oc.astype(jnp.bfloat16), wsq_ref[3],
                   preferred_element_type=jnp.float32) + ob
    x = x + attn

    # ---- FFN block: x = x + FFN(norm2(x)) ----
    h = _layernorm(x, n2w, n2b)
    f = jnp.dot(h.astype(jnp.bfloat16), wsq_ref[4],
                preferred_element_type=jnp.float32) + f1b
    f = _gelu_tanh(_layernorm(f, l3w, l3b))
    f = jnp.dot(f.astype(jnp.bfloat16), f2w_ref[...],
                preferred_element_type=jnp.float32) + f2b
    f = _gelu_tanh(_layernorm(f, l4w, l4b))
    f = jnp.dot(f.astype(jnp.bfloat16), f3w_ref[...],
                preferred_element_type=jnp.float32) + f3b

    o_ref[...] = (x + f).reshape(TB, S, H).astype(o_ref.dtype)


# ------------------- glue: pack params into kernel layout ------------------ #
def prepare_kernel_params(params):
    (n1w, n1b, n2w, n2b, inw, inb, ow, ob,
     f1w, f1b, l3w, l3b, f2w, f2b, l4w, l4b, f3w, f3b) = params
    scale = 1.0 / math.sqrt(HEAD_DIM)

    wq = inw[:, 0 * HIDDEN:1 * HIDDEN] * scale   # fold 1/sqrt(head_dim) into q
    wk = inw[:, 1 * HIDDEN:2 * HIDDEN]
    wv = inw[:, 2 * HIDDEN:3 * HIDDEN]
    bq = inb[:, 0 * HIDDEN:1 * HIDDEN] * scale
    bk = inb[:, 1 * HIDDEN:2 * HIDDEN]
    bv = inb[:, 2 * HIDDEN:3 * HIDDEN]

    # square (H,H) MXU operands in one bf16 slab: [wq, wk, wv, wo, f1w]
    wsq = jnp.stack([wq, wk, wv, ow, f1w]).astype(jnp.bfloat16)      # (5, H, H)
    vech = jnp.concatenate(
        [n1w, n1b, n2w, n2b, l3w, l3b, ob, f1b, f3b, bq, bk, bv],
        axis=0)[:, None, :]                                          # (12, 1, H)
    vecf = jnp.concatenate([f2b, l4w, l4b], axis=0)[:, None, :]      # (3, 1, 4H)
    return (wsq, f2w.astype(jnp.bfloat16), f3w.astype(jnp.bfloat16), vech, vecf)


# --------------------------------- wrapper -------------------------------- #
def _pick_batch_tile(B, S):
    """Tokens-per-step sized against per-core VMEM; >=2 steps when B >= 2."""
    try:
        vmem_bytes = pltpu.get_tpu_info().vmem_capacity_bytes
    except Exception:
        vmem_bytes = VMEM_FALLBACK
    budget = vmem_bytes // 4            # headroom for double-buffering etc.
    per_token_bytes = 4 * (4 * HIDDEN          # x/out blocks (double-buffered)
                           + 8 * HIDDEN        # q/k/v/attn/residual temporaries
                           + 2 * FFN_DIM       # ffn intermediates
                           + NHEADS * S)       # attention scores / probs
    tokens = min(TOKEN_TARGET, max(S, budget // max(per_token_bytes, 1)))
    tb = max(1, min(B, tokens // max(S, 1)))
    if B >= 2 and pl.cdiv(B, tb) < 2:   # keep >=2 grid steps for v7x megacore
        tb = pl.cdiv(B, 2)
    return tb


def transformer_layer(x, mask, params):
    B, S, H = x.shape
    assert H == HIDDEN
    if mask is None:
        kbias = jnp.zeros((B, 1, S), jnp.float32)
    else:
        kbias = jnp.where(mask, -1e30, 0.0).astype(jnp.float32).reshape(B, 1, S)

    kparams = prepare_kernel_params(params)

    TB = _pick_batch_tile(B, S)
    grid_b = pl.cdiv(B, TB)
    B_pad = grid_b * TB
    if B_pad != B:
        x = jnp.pad(x, ((0, B_pad - B), (0, 0), (0, 0)))
        kbias = jnp.pad(kbias, ((0, B_pad - B), (0, 0), (0, 0)))

    weight_specs = [pl.BlockSpec(p.shape, lambda b, _n=p.ndim: (0,) * _n)
                    for p in kparams]

    # Advisory cost hint so XLA can schedule around this small custom call.
    tok = B_pad * S
    mm_flops = tok * (2 * HIDDEN * HIDDEN * 5 + 2 * HIDDEN * FFN_DIM * 2)
    attn_flops = B_pad * NHEADS * 4 * S * S * HEAD_DIM
    transc = B_pad * NHEADS * S * S + tok * (HIDDEN + FFN_DIM) + tok * 4
    w_bytes = sum(int(np.prod(p.shape)) * p.dtype.itemsize for p in kparams)
    bytes_accessed = 2 * tok * HIDDEN * 4 + B_pad * S * 4 + w_bytes

    out = pl.pallas_call(
        transformer_layer_kernel,
        out_shape=jax.ShapeDtypeStruct((B_pad, S, H), x.dtype),
        grid_spec=pltpu.PrefetchScalarGridSpec(
            num_scalar_prefetch=0,
            grid=(grid_b,),
            in_specs=[pl.BlockSpec((TB, S, H), lambda b: (b, 0, 0)),
                      pl.BlockSpec((TB, 1, S), lambda b: (b, 0, 0))] + weight_specs,
            out_specs=pl.BlockSpec((TB, S, H), lambda b: (b, 0, 0)),
        ),
        compiler_params=pltpu.CompilerParams(
            dimension_semantics=("parallel",),
            vmem_limit_bytes=48 * 1024 * 1024),   # <= v7x 64 MiB per-core VMEM
        cost_estimate=pl.CostEstimate(flops=int(mm_flops + attn_flops),
                                      transcendentals=int(transc),
                                      bytes_accessed=int(bytes_accessed)),
    )(x, kbias, *kparams)
    return out[:B]


# -------------------- deterministic parameter construction ----------------- #
def init_params(key):
    ks = list(jax.random.split(key, 16))

    def dense(kw, kb, din, dout):
        w = 0.02 * jax.random.normal(kw, (din, dout), jnp.float32)
        b = 0.02 * jax.random.normal(kb, (1, dout), jnp.float32)
        return w, b

    def ln(dim):
        return jnp.ones((1, dim), jnp.float32), jnp.zeros((1, dim), jnp.float32)

    n1w, n1b = ln(HIDDEN)
    n2w, n2b = ln(HIDDEN)
    inw, inb = dense(ks[0], ks[1], HIDDEN, 3 * HIDDEN)   # MHA in_proj (q|k|v)
    ow, ob = dense(ks[2], ks[3], HIDDEN, HIDDEN)         # MHA out_proj
    f1w, f1b = dense(ks[4], ks[5], HIDDEN, HIDDEN)       # ffn Linear(H, H)
    l3w, l3b = ln(HIDDEN)
    f2w, f2b = dense(ks[6], ks[7], HIDDEN, FFN_DIM)      # ffn Linear(H, 4H)
    l4w, l4b = ln(FFN_DIM)
    f3w, f3b = dense(ks[8], ks[9], FFN_DIM, HIDDEN)      # ffn Linear(4H, H)
    return (n1w, n1b, n2w, n2b, inw, inb, ow, ob,
            f1w, f1b, l3w, l3b, f2w, f2b, l4w, l4b, f3w, f3b)


# --------------------------- pure-JAX reference ---------------------------- #
def reference(x, mask, params):
    (n1w, n1b, n2w, n2b, inw, inb, ow, ob,
     f1w, f1b, l3w, l3b, f2w, f2b, l4w, l4b, f3w, f3b) = params
    B, S, H = x.shape
    kbias = (jnp.where(mask, -1e30, 0.0).astype(jnp.float32)
             if mask is not None else jnp.zeros((B, S), jnp.float32))

    def lnorm(v, w, b):
        mu = jnp.mean(v, -1, keepdims=True)
        var = jnp.mean((v - mu) ** 2, -1, keepdims=True)
        return (v - mu) / jnp.sqrt(var + LN_EPS) * w + b

    def gelu(v):
        return 0.5 * v * (1 + jnp.tanh(SQRT_2_OVER_PI * (v + 0.044715 * v ** 3)))

    h = lnorm(x, n1w, n1b)
    qkv = h @ inw + inb
    q, k, v = jnp.split(qkv, 3, axis=-1)
    q = q.reshape(B, S, NHEADS, HEAD_DIM).transpose(0, 2, 1, 3)
    k = k.reshape(B, S, NHEADS, HEAD_DIM).transpose(0, 2, 1, 3)
    v = v.reshape(B, S, NHEADS, HEAD_DIM).transpose(0, 2, 1, 3)
    s = jnp.einsum('bhqd,bhkd->bhqk', q, k) / math.sqrt(HEAD_DIM)
    s = s + kbias[:, None, None, :]
    p = jax.nn.softmax(s, axis=-1)
    a = jnp.einsum('bhqk,bhkd->bhqd', p, v).transpose(0, 2, 1, 3).reshape(B, S, H)
    x = x + (a @ ow + ob)

    h = lnorm(x, n2w, n2b)
    f = h @ f1w + f1b
    f = gelu(lnorm(f, l3w, l3b))
    f = f @ f2w + f2b
    f = gelu(lnorm(f, l4w, l4b))
    f = f @ f3w + f3b
    return x + f


# ----------------------------------- main ---------------------------------- #
if __name__ == "__main__":
    key = jax.random.PRNGKey(0)
    kx, kp = jax.random.split(key)
    B, S = 2, 8
    x = jax.random.normal(kx, (B, S, HIDDEN), jnp.float32)
    # key_padding_mask: True == padded/ignored key (PyTorch semantics)
    mask = jnp.array([[False] * S,
                      [False] * (S - 2) + [True] * 2])
    params = init_params(kp)

    out = jax.block_until_ready(transformer_layer(x, mask, params))

    ref = reference(x, mask, params)
    np.testing.assert_allclose(np.asarray(out), np.asarray(ref),
                               rtol=2e-2, atol=2e-2)
    print("KERNEL_OK")
</pallas_src>

<mosaic_0001>
module attributes {stable_mosaic.version = 11 : i64} {
  func.func @transformer_layer_kernel(%arg0: i32, %arg1: memref<1x8x32xf32, #tpu.memory_space<vmem>>, %arg2: memref<1x1x8xf32, #tpu.memory_space<vmem>>, %arg3: memref<5x32x32xbf16, #tpu.memory_space<vmem>>, %arg4: memref<32x128xbf16, #tpu.memory_space<vmem>>, %arg5: memref<128x32xbf16, #tpu.memory_space<vmem>>, %arg6: memref<12x1x32xf32, #tpu.memory_space<vmem>>, %arg7: memref<3x1x128xf32, #tpu.memory_space<vmem>>, %arg8: memref<1x8x32xf32, #tpu.memory_space<vmem>>) attributes {dimension_semantics = [#tpu.dimension_semantics<parallel>], iteration_bounds = array<i64: 2>, scalar_prefetch = 0 : i64, scratch_operands = 0 : i64, tpu.core_type = #tpu.core_type<tc>, window_params = [{transform_indices = @transform_0, window_bounds = array<i64: 1, 8, 32>}, {transform_indices = @transform_1, window_bounds = array<i64: 1, 1, 8>}, {pipeline_mode = #tpu.pipeline_mode<synchronous>, transform_indices = @transform_2, window_bounds = array<i64: 5, 32, 32>}, {pipeline_mode = #tpu.pipeline_mode<synchronous>, transform_indices = @transform_3, window_bounds = array<i64: 32, 128>}, {pipeline_mode = #tpu.pipeline_mode<synchronous>, transform_indices = @transform_4, window_bounds = array<i64: 128, 32>}, {pipeline_mode = #tpu.pipeline_mode<synchronous>, transform_indices = @transform_5, window_bounds = array<i64: 12, 1, 32>}, {pipeline_mode = #tpu.pipeline_mode<synchronous>, transform_indices = @transform_6, window_bounds = array<i64: 3, 1, 128>}, {transform_indices = @transform_7, window_bounds = array<i64: 1, 8, 32>}]} {
    %c0 = arith.constant 0 : index
    %c0_0 = arith.constant 0 : index
    %c0_1 = arith.constant 0 : index
    %0 = vector.load %arg1[%c0, %c0_0, %c0_1] : memref<1x8x32xf32, #tpu.memory_space<vmem>>, vector<1x8x32xf32>
    %1 = vector.shape_cast %0 : vector<1x8x32xf32> to vector<8x32xf32>
    %c0_2 = arith.constant 0 : index
    %c0_3 = arith.constant 0 : index
    %c0_4 = arith.constant 0 : index
    %2 = vector.load %arg2[%c0_2, %c0_3, %c0_4] : memref<1x1x8xf32, #tpu.memory_space<vmem>>, vector<1x1x8xf32>
    %c0_5 = arith.constant 0 : index
    %c0_6 = arith.constant 0 : index
    %c0_7 = arith.constant 0 : index
    %3 = vector.load %arg6[%c0_5, %c0_6, %c0_7] : memref<12x1x32xf32, #tpu.memory_space<vmem>>, vector<1x1x32xf32>
    %4 = vector.shape_cast %3 : vector<1x1x32xf32> to vector<1x32xf32>
    %c1 = arith.constant 1 : index
    %c0_8 = arith.constant 0 : index
    %c0_9 = arith.constant 0 : index
    %5 = vector.load %arg6[%c1, %c0_8, %c0_9] : memref<12x1x32xf32, #tpu.memory_space<vmem>>, vector<1x1x32xf32>
    %6 = vector.shape_cast %5 : vector<1x1x32xf32> to vector<1x32xf32>
    %c2 = arith.constant 2 : index
    %c0_10 = arith.constant 0 : index
    %c0_11 = arith.constant 0 : index
    %7 = vector.load %arg6[%c2, %c0_10, %c0_11] : memref<12x1x32xf32, #tpu.memory_space<vmem>>, vector<1x1x32xf32>
    %8 = vector.shape_cast %7 : vector<1x1x32xf32> to vector<1x32xf32>
    %c3 = arith.constant 3 : index
    %c0_12 = arith.constant 0 : index
    %c0_13 = arith.constant 0 : index
    %9 = vector.load %arg6[%c3, %c0_12, %c0_13] : memref<12x1x32xf32, #tpu.memory_space<vmem>>, vector<1x1x32xf32>
    %10 = vector.shape_cast %9 : vector<1x1x32xf32> to vector<1x32xf32>
    %c4 = arith.constant 4 : index
    %c0_14 = arith.constant 0 : index
    %c0_15 = arith.constant 0 : index
    %11 = vector.load %arg6[%c4, %c0_14, %c0_15] : memref<12x1x32xf32, #tpu.memory_space<vmem>>, vector<1x1x32xf32>
    %12 = vector.shape_cast %11 : vector<1x1x32xf32> to vector<1x32xf32>
    %c5 = arith.constant 5 : index
    %c0_16 = arith.constant 0 : index
    %c0_17 = arith.constant 0 : index
    %13 = vector.load %arg6[%c5, %c0_16, %c0_17] : memref<12x1x32xf32, #tpu.memory_space<vmem>>, vector<1x1x32xf32>
    %14 = vector.shape_cast %13 : vector<1x1x32xf32> to vector<1x32xf32>
    %c6 = arith.constant 6 : index
    %c0_18 = arith.constant 0 : index
    %c0_19 = arith.constant 0 : index
    %15 = vector.load %arg6[%c6, %c0_18, %c0_19] : memref<12x1x32xf32, #tpu.memory_space<vmem>>, vector<1x1x32xf32>
    %16 = vector.shape_cast %15 : vector<1x1x32xf32> to vector<1x32xf32>
    %c7 = arith.constant 7 : index
    %c0_20 = arith.constant 0 : index
    %c0_21 = arith.constant 0 : index
    %17 = vector.load %arg6[%c7, %c0_20, %c0_21] : memref<12x1x32xf32, #tpu.memory_space<vmem>>, vector<1x1x32xf32>
    %18 = vector.shape_cast %17 : vector<1x1x32xf32> to vector<1x32xf32>
    %c8 = arith.constant 8 : index
    %c0_22 = arith.constant 0 : index
    %c0_23 = arith.constant 0 : index
    %19 = vector.load %arg6[%c8, %c0_22, %c0_23] : memref<12x1x32xf32, #tpu.memory_space<vmem>>, vector<1x1x32xf32>
    %20 = vector.shape_cast %19 : vector<1x1x32xf32> to vector<1x32xf32>
    %c9 = arith.constant 9 : index
    %c0_24 = arith.constant 0 : index
    %c0_25 = arith.constant 0 : index
    %21 = vector.load %arg6[%c9, %c0_24, %c0_25] : memref<12x1x32xf32, #tpu.memory_space<vmem>>, vector<1x1x32xf32>
    %22 = vector.shape_cast %21 : vector<1x1x32xf32> to vector<1x32xf32>
    %c10 = arith.constant 10 : index
    %c0_26 = arith.constant 0 : index
    %c0_27 = arith.constant 0 : index
    %23 = vector.load %arg6[%c10, %c0_26, %c0_27] : memref<12x1x32xf32, #tpu.memory_space<vmem>>, vector<1x1x32xf32>
    %24 = vector.shape_cast %23 : vector<1x1x32xf32> to vector<1x32xf32>
    %c11 = arith.constant 11 : index
    %c0_28 = arith.constant 0 : index
    %c0_29 = arith.constant 0 : index
    %25 = vector.load %arg6[%c11, %c0_28, %c0_29] : memref<12x1x32xf32, #tpu.memory_space<vmem>>, vector<1x1x32xf32>
    %26 = vector.shape_cast %25 : vector<1x1x32xf32> to vector<1x32xf32>
    %c0_30 = arith.constant 0 : index
    %c0_31 = arith.constant 0 : index
    %c0_32 = arith.constant 0 : index
    %27 = vector.load %arg7[%c0_30, %c0_31, %c0_32] : memref<3x1x128xf32, #tpu.memory_space<vmem>>, vector<1x1x128xf32>
    %28 = vector.shape_cast %27 : vector<1x1x128xf32> to vector<1x128xf32>
    %c1_33 = arith.constant 1 : index
    %c0_34 = arith.constant 0 : index
    %c0_35 = arith.constant 0 : index
    %29 = vector.load %arg7[%c1_33, %c0_34, %c0_35] : memref<3x1x128xf32, #tpu.memory_space<vmem>>, vector<1x1x128xf32>
    %30 = vector.shape_cast %29 : vector<1x1x128xf32> to vector<1x128xf32>
    %c2_36 = arith.constant 2 : index
    %c0_37 = arith.constant 0 : index
    %c0_38 = arith.constant 0 : index
    %31 = vector.load %arg7[%c2_36, %c0_37, %c0_38] : memref<3x1x128xf32, #tpu.memory_space<vmem>>, vector<1x1x128xf32>
    %32 = vector.shape_cast %31 : vector<1x1x128xf32> to vector<1x128xf32>
    %cst = arith.constant dense<0.000000e+00> : vector<8xf32>
    %33 = vector.multi_reduction <add>, %1, %cst [1] : vector<8x32xf32> to vector<8xf32>
    %34 = vector.shape_cast %33 : vector<8xf32> to vector<8x1xf32>
    %cst_39 = arith.constant 3.200000e+01 : f32
    %35 = vector.broadcast %cst_39 : f32 to vector<8x1xf32>
    %36 = arith.divf %34, %35 : vector<8x1xf32>
    %37 = vector.broadcast %36 : vector<8x1xf32> to vector<8x32xf32>
    %38 = arith.subf %1, %37 : vector<8x32xf32>
    %39 = arith.mulf %38, %38 : vector<8x32xf32>
    %cst_40 = arith.constant dense<0.000000e+00> : vector<8xf32>
    %40 = vector.multi_reduction <add>, %39, %cst_40 [1] : vector<8x32xf32> to vector<8xf32>
    %41 = vector.shape_cast %40 : vector<8xf32> to vector<8x1xf32>
    %cst_41 = arith.constant 3.200000e+01 : f32
    %42 = vector.broadcast %cst_41 : f32 to vector<8x1xf32>
    %43 = arith.divf %41, %42 : vector<8x1xf32>
    %44 = vector.broadcast %36 : vector<8x1xf32> to vector<8x32xf32>
    %45 = arith.subf %1, %44 : vector<8x32xf32>
    %cst_42 = arith.constant 9.99999974E-6 : f32
    %46 = vector.broadcast %cst_42 : f32 to vector<8x1xf32>
    %47 = arith.addf %43, %46 : vector<8x1xf32>
    %48 = math.rsqrt %47 : vector<8x1xf32>
    %49 = vector.broadcast %48 : vector<8x1xf32> to vector<8x32xf32>
    %50 = arith.mulf %45, %49 : vector<8x32xf32>
    %51 = vector.broadcast %4 : vector<1x32xf32> to vector<8x32xf32>
    %52 = arith.mulf %50, %51 : vector<8x32xf32>
    %53 = vector.broadcast %6 : vector<1x32xf32> to vector<8x32xf32>
    %54 = arith.addf %52, %53 : vector<8x32xf32>
    %55 = arith.truncf %54 : vector<8x32xf32> to vector<8x32xbf16>
    %c0_43 = arith.constant 0 : index
    %c0_44 = arith.constant 0 : index
    %c0_45 = arith.constant 0 : index
    %56 = vector.load %arg3[%c0_43, %c0_44, %c0_45] : memref<5x32x32xbf16, #tpu.memory_space<vmem>>, vector<1x32x32xbf16>
    %57 = vector.shape_cast %56 : vector<1x32x32xbf16> to vector<32x32xbf16>
    %cst_46 = arith.constant dense<0.000000e+00> : vector<8x32xf32>
    %58 = tpu.matmul %55, %57, %cst_46 {dimension_numbers = #tpu.dot_dimension_numbers<[1], [0], [0], [1], [0, 0, 1, 1], [], []>} : vector<8x32xbf16>, vector<32x32xbf16>, vector<8x32xf32> -> vector<8x32xf32>
    %59 = vector.broadcast %22 : vector<1x32xf32> to vector<8x32xf32>
    %60 = arith.addf %58, %59 : vector<8x32xf32>
    %c1_47 = arith.constant 1 : index
    %c0_48 = arith.constant 0 : index
    %c0_49 = arith.constant 0 : index
    %61 = vector.load %arg3[%c1_47, %c0_48, %c0_49] : memref<5x32x32xbf16, #tpu.memory_space<vmem>>, vector<1x32x32xbf16>
    %62 = vector.shape_cast %61 : vector<1x32x32xbf16> to vector<32x32xbf16>
    %cst_50 = arith.constant dense<0.000000e+00> : vector<8x32xf32>
    %63 = tpu.matmul %55, %62, %cst_50 {dimension_numbers = #tpu.dot_dimension_numbers<[1], [0], [0], [1], [0, 0, 1, 1], [], []>} : vector<8x32xbf16>, vector<32x32xbf16>, vector<8x32xf32> -> vector<8x32xf32>
    %64 = vector.broadcast %24 : vector<1x32xf32> to vector<8x32xf32>
    %65 = arith.addf %63, %64 : vector<8x32xf32>
    %c2_51 = arith.constant 2 : index
    %c0_52 = arith.constant 0 : index
    %c0_53 = arith.constant 0 : index
    %66 = vector.load %arg3[%c2_51, %c0_52, %c0_53] : memref<5x32x32xbf16, #tpu.memory_space<vmem>>, vector<1x32x32xbf16>
    %67 = vector.shape_cast %66 : vector<1x32x32xbf16> to vector<32x32xbf16>
    %cst_54 = arith.constant dense<0.000000e+00> : vector<8x32xf32>
    %68 = tpu.matmul %55, %67, %cst_54 {dimension_numbers = #tpu.dot_dimension_numbers<[1], [0], [0], [1], [0, 0, 1, 1], [], []>} : vector<8x32xbf16>, vector<32x32xbf16>, vector<8x32xf32> -> vector<8x32xf32>
    %69 = vector.broadcast %26 : vector<1x32xf32> to vector<8x32xf32>
    %70 = arith.addf %68, %69 : vector<8x32xf32>
    %71 = vector.extract_strided_slice %60 {offsets = [0, 0], sizes = [8, 8], strides = [1, 1]} : vector<8x32xf32> to vector<8x8xf32>
    %72 = vector.extract_strided_slice %60 {offsets = [0, 8], sizes = [8, 8], strides = [1, 1]} : vector<8x32xf32> to vector<8x8xf32>
    %73 = vector.extract_strided_slice %60 {offsets = [0, 16], sizes = [8, 8], strides = [1, 1]} : vector<8x32xf32> to vector<8x8xf32>
    %74 = vector.extract_strided_slice %60 {offsets = [0, 24], sizes = [8, 8], strides = [1, 1]} : vector<8x32xf32> to vector<8x8xf32>
    %75 = tpu.concatenate %71, %72, %73, %74 in 0 : vector<8x8xf32>, vector<8x8xf32>, vector<8x8xf32>, vector<8x8xf32> -> vector<32x8xf32>
    %76 = vector.shape_cast %75 : vector<32x8xf32> to vector<4x8x8xf32>
    %77 = arith.truncf %76 : vector<4x8x8xf32> to vector<4x8x8xbf16>
    %78 = vector.extract_strided_slice %65 {offsets = [0, 0], sizes = [8, 8], strides = [1, 1]} : vector<8x32xf32> to vector<8x8xf32>
    %79 = vector.extract_strided_slice %65 {offsets = [0, 8], sizes = [8, 8], strides = [1, 1]} : vector<8x32xf32> to vector<8x8xf32>
    %80 = vector.extract_strided_slice %65 {offsets = [0, 16], sizes = [8, 8], strides = [1, 1]} : vector<8x32xf32> to vector<8x8xf32>
    %81 = vector.extract_strided_slice %65 {offsets = [0, 24], sizes = [8, 8], strides = [1, 1]} : vector<8x32xf32> to vector<8x8xf32>
    %82 = tpu.concatenate %78, %79, %80, %81 in 0 : vector<8x8xf32>, vector<8x8xf32>, vector<8x8xf32>, vector<8x8xf32> -> vector<32x8xf32>
    %83 = vector.shape_cast %82 : vector<32x8xf32> to vector<4x8x8xf32>
    %84 = arith.truncf %83 : vector<4x8x8xf32> to vector<4x8x8xbf16>
    %85 = vector.extract_strided_slice %70 {offsets = [0, 0], sizes = [8, 8], strides = [1, 1]} : vector<8x32xf32> to vector<8x8xf32>
    %86 = vector.extract_strided_slice %70 {offsets = [0, 8], sizes = [8, 8], strides = [1, 1]} : vector<8x32xf32> to vector<8x8xf32>
    %87 = vector.extract_strided_slice %70 {offsets = [0, 16], sizes = [8, 8], strides = [1, 1]} : vector<8x32xf32> to vector<8x8xf32>
    %88 = vector.extract_strided_slice %70 {offsets = [0, 24], sizes = [8, 8], strides = [1, 1]} : vector<8x32xf32> to vector<8x8xf32>
    %89 = tpu.concatenate %85, %86, %87, %88 in 0 : vector<8x8xf32>, vector<8x8xf32>, vector<8x8xf32>, vector<8x8xf32> -> vector<32x8xf32>
    %90 = vector.shape_cast %89 : vector<32x8xf32> to vector<4x8x8xf32>
    %91 = arith.truncf %90 : vector<4x8x8xf32> to vector<4x8x8xbf16>
    "tpu.trace_start"() <{level = 10 : i32, message = "bqd,bkd->bqk"}> : () -> ()
    %cst_55 = arith.constant dense<0.000000e+00> : vector<4x8x8xf32>
    %92 = tpu.matmul %77, %84, %cst_55 {dimension_numbers = #tpu.dot_dimension_numbers<[2], [2], [1], [1], [0, 0, 0, 1, 1, 1], [0], [0]>} : vector<4x8x8xbf16>, vector<4x8x8xbf16>, vector<4x8x8xf32> -> vector<4x8x8xf32>
    "tpu.trace_stop"() : () -> ()
    %93 = vector.shape_cast %92 : vector<4x8x8xf32> to vector<4x1x8x8xf32>
    %94 = vector.shape_cast %2 : vector<1x1x8xf32> to vector<1x1x1x8xf32>
    %95 = vector.broadcast %94 : vector<1x1x1x8xf32> to vector<4x1x8x8xf32>
    %96 = arith.addf %93, %95 : vector<4x1x8x8xf32>
    %cst_56 = arith.constant dense<0xFF800000> : vector<4x1x8xf32>
    %97 = vector.multi_reduction <maximumf>, %96, %cst_56 [3] : vector<4x1x8x8xf32> to vector<4x1x8xf32>
    %98 = vector.shape_cast %97 : vector<4x1x8xf32> to vector<4x1x8x1xf32>
    %99 = vector.broadcast %98 : vector<4x1x8x1xf32> to vector<4x1x8x8xf32>
    %100 = arith.subf %96, %99 : vector<4x1x8x8xf32>
    %101 = math.exp %100 : vector<4x1x8x8xf32>
    %cst_57 = arith.constant dense<0.000000e+00> : vector<4x1x8xf32>
    %102 = vector.multi_reduction <add>, %101, %cst_57 [3] : vector<4x1x8x8xf32> to vector<4x1x8xf32>
    %103 = vector.shape_cast %102 : vector<4x1x8xf32> to vector<4x1x8x1xf32>
    %104 = tpu.reciprocal %103 {approx = true} : vector<4x1x8x1xf32> -> vector<4x1x8x1xf32>
    %105 = vector.broadcast %104 : vector<4x1x8x1xf32> to vector<4x1x8x8xf32>
    %106 = arith.mulf %101, %105 : vector<4x1x8x8xf32>
    %107 = vector.shape_cast %106 : vector<4x1x8x8xf32> to vector<4x8x8xf32>
    %108 = arith.truncf %107 : vector<4x8x8xf32> to vector<4x8x8xbf16>
    "tpu.trace_start"() <{level = 10 : i32, message = "bqk,bkd->bqd"}> : () -> ()
    %cst_58 = arith.constant dense<0.000000e+00> : vector<4x8x8xf32>
    %109 = tpu.matmul %108, %91, %cst_58 {dimension_numbers = #tpu.dot_dimension_numbers<[2], [1], [1], [2], [0, 0, 0, 1, 1, 2], [0], [0]>} : vector<4x8x8xbf16>, vector<4x8x8xbf16>, vector<4x8x8xf32> -> vector<4x8x8xf32>
    "tpu.trace_stop"() : () -> ()
    %110 = vector.shape_cast %109 : vector<4x8x8xf32> to vector<32x8xf32>
    %111 = vector.extract_strided_slice %110 {offsets = [0, 0], sizes = [8, 8], strides = [1, 1]} : vector<32x8xf32> to vector<8x8xf32>
    %112 = vector.extract_strided_slice %110 {offsets = [8, 0], sizes = [8, 8], strides = [1, 1]} : vector<32x8xf32> to vector<8x8xf32>
    %113 = vector.extract_strided_slice %110 {offsets = [16, 0], sizes = [8, 8], strides = [1, 1]} : vector<32x8xf32> to vector<8x8xf32>
    %114 = vector.extract_strided_slice %110 {offsets = [24, 0], sizes = [8, 8], strides = [1, 1]} : vector<32x8xf32> to vector<8x8xf32>
    %115 = tpu.concatenate %111, %112, %113, %114 in 1 : vector<8x8xf32>, vector<8x8xf32>, vector<8x8xf32>, vector<8x8xf32> -> vector<8x32xf32>
    %116 = arith.truncf %115 : vector<8x32xf32> to vector<8x32xbf16>
    %c3_59 = arith.constant 3 : index
    %c0_60 = arith.constant 0 : index
    %c0_61 = arith.constant 0 : index
    %117 = vector.load %arg3[%c3_59, %c0_60, %c0_61] : memref<5x32x32xbf16, #tpu.memory_space<vmem>>, vector<1x32x32xbf16>
    %118 = vector.shape_cast %117 : vector<1x32x32xbf16> to vector<32x32xbf16>
    %cst_62 = arith.constant dense<0.000000e+00> : vector<8x32xf32>
    %119 = tpu.matmul %116, %118, %cst_62 {dimension_numbers = #tpu.dot_dimension_numbers<[1], [0], [0], [1], [0, 0, 1, 1], [], []>} : vector<8x32xbf16>, vector<32x32xbf16>, vector<8x32xf32> -> vector<8x32xf32>
    %120 = vector.broadcast %16 : vector<1x32xf32> to vector<8x32xf32>
    %121 = arith.addf %119, %120 : vector<8x32xf32>
    %122 = arith.addf %1, %121 : vector<8x32xf32>
    %cst_63 = arith.constant dense<0.000000e+00> : vector<8xf32>
    %123 = vector.multi_reduction <add>, %122, %cst_63 [1] : vector<8x32xf32> to vector<8xf32>
    %124 = vector.shape_cast %123 : vector<8xf32> to vector<8x1xf32>
    %cst_64 = arith.constant 3.200000e+01 : f32
    %125 = vector.broadcast %cst_64 : f32 to vector<8x1xf32>
    %126 = arith.divf %124, %125 : vector<8x1xf32>
    %127 = vector.broadcast %126 : vector<8x1xf32> to vector<8x32xf32>
    %128 = arith.subf %122, %127 : vector<8x32xf32>
    %129 = arith.mulf %128, %128 : vector<8x32xf32>
    %cst_65 = arith.constant dense<0.000000e+00> : vector<8xf32>
    %130 = vector.multi_reduction <add>, %129, %cst_65 [1] : vector<8x32xf32> to vector<8xf32>
    %131 = vector.shape_cast %130 : vector<8xf32> to vector<8x1xf32>
    %cst_66 = arith.constant 3.200000e+01 : f32
    %132 = vector.broadcast %cst_66 : f32 to vector<8x1xf32>
    %133 = arith.divf %131, %132 : vector<8x1xf32>
    %134 = vector.broadcast %126 : vector<8x1xf32> to vector<8x32xf32>
    %135 = arith.subf %122, %134 : vector<8x32xf32>
    %cst_67 = arith.constant 9.99999974E-6 : f32
    %136 = vector.broadcast %cst_67 : f32 to vector<8x1xf32>
    %137 = arith.addf %133, %136 : vector<8x1xf32>
    %138 = math.rsqrt %137 : vector<8x1xf32>
    %139 = vector.broadcast %138 : vector<8x1xf32> to vector<8x32xf32>
    %140 = arith.mulf %135, %139 : vector<8x32xf32>
    %141 = vector.broadcast %8 : vector<1x32xf32> to vector<8x32xf32>
    %142 = arith.mulf %140, %141 : vector<8x32xf32>
    %143 = vector.broadcast %10 : vector<1x32xf32> to vector<8x32xf32>
    %144 = arith.addf %142, %143 : vector<8x32xf32>
    %145 = arith.truncf %144 : vector<8x32xf32> to vector<8x32xbf16>
    %c4_68 = arith.constant 4 : index
    %c0_69 = arith.constant 0 : index
    %c0_70 = arith.constant 0 : index
    %146 = vector.load %arg3[%c4_68, %c0_69, %c0_70] : memref<5x32x32xbf16, #tpu.memory_space<vmem>>, vector<1x32x32xbf16>
    %147 = vector.shape_cast %146 : vector<1x32x32xbf16> to vector<32x32xbf16>
    %cst_71 = arith.constant dense<0.000000e+00> : vector<8x32xf32>
    %148 = tpu.matmul %145, %147, %cst_71 {dimension_numbers = #tpu.dot_dimension_numbers<[1], [0], [0], [1], [0, 0, 1, 1], [], []>} : vector<8x32xbf16>, vector<32x32xbf16>, vector<8x32xf32> -> vector<8x32xf32>
    %149 = vector.broadcast %18 : vector<1x32xf32> to vector<8x32xf32>
    %150 = arith.addf %148, %149 : vector<8x32xf32>
    %cst_72 = arith.constant dense<0.000000e+00> : vector<8xf32>
    %151 = vector.multi_reduction <add>, %150, %cst_72 [1] : vector<8x32xf32> to vector<8xf32>
    %152 = vector.shape_cast %151 : vector<8xf32> to vector<8x1xf32>
    %cst_73 = arith.constant 3.200000e+01 : f32
    %153 = vector.broadcast %cst_73 : f32 to vector<8x1xf32>
    %154 = arith.divf %152, %153 : vector<8x1xf32>
    %155 = vector.broadcast %154 : vector<8x1xf32> to vector<8x32xf32>
    %156 = arith.subf %150, %155 : vector<8x32xf32>
    %157 = arith.mulf %156, %156 : vector<8x32xf32>
    %cst_74 = arith.constant dense<0.000000e+00> : vector<8xf32>
    %158 = vector.multi_reduction <add>, %157, %cst_74 [1] : vector<8x32xf32> to vector<8xf32>
    %159 = vector.shape_cast %158 : vector<8xf32> to vector<8x1xf32>
    %cst_75 = arith.constant 3.200000e+01 : f32
    %160 = vector.broadcast %cst_75 : f32 to vector<8x1xf32>
    %161 = arith.divf %159, %160 : vector<8x1xf32>
    %162 = vector.broadcast %154 : vector<8x1xf32> to vector<8x32xf32>
    %163 = arith.subf %150, %162 : vector<8x32xf32>
    %cst_76 = arith.constant 9.99999974E-6 : f32
    %164 = vector.broadcast %cst_76 : f32 to vector<8x1xf32>
    %165 = arith.addf %161, %164 : vector<8x1xf32>
    %166 = math.rsqrt %165 : vector<8x1xf32>
    %167 = vector.broadcast %166 : vector<8x1xf32> to vector<8x32xf32>
    %168 = arith.mulf %163, %167 : vector<8x32xf32>
    %169 = vector.broadcast %12 : vector<1x32xf32> to vector<8x32xf32>
    %170 = arith.mulf %168, %169 : vector<8x32xf32>
    %171 = vector.broadcast %14 : vector<1x32xf32> to vector<8x32xf32>
    %172 = arith.addf %170, %171 : vector<8x32xf32>
    %cst_77 = arith.constant 5.000000e-01 : f32
    %173 = vector.broadcast %cst_77 : f32 to vector<8x32xf32>
    %174 = arith.mulf %173, %172 : vector<8x32xf32>
    %cst_78 = arith.constant 4.471500e-02 : f32
    %175 = vector.broadcast %cst_78 : f32 to vector<8x32xf32>
    %176 = arith.mulf %175, %172 : vector<8x32xf32>
    %177 = arith.mulf %176, %172 : vector<8x32xf32>
    %178 = arith.mulf %177, %172 : vector<8x32xf32>
    %179 = arith.addf %172, %178 : vector<8x32xf32>
    %cst_79 = arith.constant 0.797884583 : f32
    %180 = vector.broadcast %cst_79 : f32 to vector<8x32xf32>
    %181 = arith.mulf %180, %179 : vector<8x32xf32>
    %182 = math.tanh %181 : vector<8x32xf32>
    %cst_80 = arith.constant 1.000000e+00 : f32
    %183 = vector.broadcast %cst_80 : f32 to vector<8x32xf32>
    %184 = arith.addf %183, %182 : vector<8x32xf32>
    %185 = arith.mulf %174, %184 : vector<8x32xf32>
    %186 = arith.truncf %185 : vector<8x32xf32> to vector<8x32xbf16>
    %c0_81 = arith.constant 0 : index
    %c0_82 = arith.constant 0 : index
    %187 = vector.load %arg4[%c0_81, %c0_82] : memref<32x128xbf16, #tpu.memory_space<vmem>>, vector<32x128xbf16>
    %cst_83 = arith.constant dense<0.000000e+00> : vector<8x128xf32>
    %188 = tpu.matmul %186, %187, %cst_83 {dimension_numbers = #tpu.dot_dimension_numbers<[1], [0], [0], [1], [0, 0, 1, 1], [], []>} : vector<8x32xbf16>, vector<32x128xbf16>, vector<8x128xf32> -> vector<8x128xf32>
    %189 = vector.broadcast %28 : vector<1x128xf32> to vector<8x128xf32>
    %190 = arith.addf %188, %189 : vector<8x128xf32>
    %cst_84 = arith.constant dense<0.000000e+00> : vector<8xf32>
    %191 = vector.multi_reduction <add>, %190, %cst_84 [1] : vector<8x128xf32> to vector<8xf32>
    %192 = vector.shape_cast %191 : vector<8xf32> to vector<8x1xf32>
    %cst_85 = arith.constant 1.280000e+02 : f32
    %193 = vector.broadcast %cst_85 : f32 to vector<8x1xf32>
    %194 = arith.divf %192, %193 : vector<8x1xf32>
    %195 = vector.broadcast %194 : vector<8x1xf32> to vector<8x128xf32>
    %196 = arith.subf %190, %195 : vector<8x128xf32>
    %197 = arith.mulf %196, %196 : vector<8x128xf32>
    %cst_86 = arith.constant dense<0.000000e+00> : vector<8xf32>
    %198 = vector.multi_reduction <add>, %197, %cst_86 [1] : vector<8x128xf32> to vector<8xf32>
    %199 = vector.shape_cast %198 : vector<8xf32> to vector<8x1xf32>
    %cst_87 = arith.constant 1.280000e+02 : f32
    %200 = vector.broadcast %cst_87 : f32 to vector<8x1xf32>
    %201 = arith.divf %199, %200 : vector<8x1xf32>
    %202 = vector.broadcast %194 : vector<8x1xf32> to vector<8x128xf32>
    %203 = arith.subf %190, %202 : vector<8x128xf32>
    %cst_88 = arith.constant 9.99999974E-6 : f32
    %204 = vector.broadcast %cst_88 : f32 to vector<8x1xf32>
    %205 = arith.addf %201, %204 : vector<8x1xf32>
    %206 = math.rsqrt %205 : vector<8x1xf32>
    %207 = vector.broadcast %206 : vector<8x1xf32> to vector<8x128xf32>
    %208 = arith.mulf %203, %207 : vector<8x128xf32>
    %209 = vector.broadcast %30 : vector<1x128xf32> to vector<8x128xf32>
    %210 = arith.mulf %208, %209 : vector<8x128xf32>
    %211 = vector.broadcast %32 : vector<1x128xf32> to vector<8x128xf32>
    %212 = arith.addf %210, %211 : vector<8x128xf32>
    %cst_89 = arith.constant 5.000000e-01 : f32
    %213 = vector.broadcast %cst_89 : f32 to vector<8x128xf32>
    %214 = arith.mulf %213, %212 : vector<8x128xf32>
    %cst_90 = arith.constant 4.471500e-02 : f32
    %215 = vector.broadcast %cst_90 : f32 to vector<8x128xf32>
    %216 = arith.mulf %215, %212 : vector<8x128xf32>
    %217 = arith.mulf %216, %212 : vector<8x128xf32>
    %218 = arith.mulf %217, %212 : vector<8x128xf32>
    %219 = arith.addf %212, %218 : vector<8x128xf32>
    %cst_91 = arith.constant 0.797884583 : f32
    %220 = vector.broadcast %cst_91 : f32 to vector<8x128xf32>
    %221 = arith.mulf %220, %219 : vector<8x128xf32>
    %222 = math.tanh %221 : vector<8x128xf32>
    %cst_92 = arith.constant 1.000000e+00 : f32
    %223 = vector.broadcast %cst_92 : f32 to vector<8x128xf32>
    %224 = arith.addf %223, %222 : vector<8x128xf32>
    %225 = arith.mulf %214, %224 : vector<8x128xf32>
    %226 = arith.truncf %225 : vector<8x128xf32> to vector<8x128xbf16>
    %c0_93 = arith.constant 0 : index
    %c0_94 = arith.constant 0 : index
    %227 = vector.load %arg5[%c0_93, %c0_94] : memref<128x32xbf16, #tpu.memory_space<vmem>>, vector<128x32xbf16>
    %cst_95 = arith.constant dense<0.000000e+00> : vector<8x32xf32>
    %228 = tpu.matmul %226, %227, %cst_95 {dimension_numbers = #tpu.dot_dimension_numbers<[1], [0], [0], [1], [0, 0, 1, 1], [], []>} : vector<8x128xbf16>, vector<128x32xbf16>, vector<8x32xf32> -> vector<8x32xf32>
    %229 = vector.broadcast %20 : vector<1x32xf32> to vector<8x32xf32>
    %230 = arith.addf %228, %229 : vector<8x32xf32>
    %231 = arith.addf %122, %230 : vector<8x32xf32>
    %232 = vector.shape_cast %231 : vector<8x32xf32> to vector<1x8x32xf32>
    %c0_96 = arith.constant 0 : index
    %c0_97 = arith.constant 0 : index
    %c0_98 = arith.constant 0 : index
    %233 = vector.load %arg8[%c0_96, %c0_97, %c0_98] : memref<1x8x32xf32, #tpu.memory_space<vmem>>, vector<1x8x32xf32>
    tpu.vector_store %arg8[%c0_96, %c0_97, %c0_98], %232 {strides = array<i32>} : memref<1x8x32xf32, #tpu.memory_space<vmem>>, vector<1x8x32xf32>,
    return
  }
  func.func @transform_0(%arg0: i32) -> (i32, i32, i32) {
    %c0_i32 = arith.constant 0 : i32
    %c0_i32_0 = arith.constant 0 : i32
    %c0_i32_1 = arith.constant 0 : i32
    return %arg0, %c0_i32, %c0_i32_0 : i32, i32, i32
  }
  func.func @transform_1(%arg0: i32) -> (i32, i32, i32) {
    %c0_i32 = arith.constant 0 : i32
    %c0_i32_0 = arith.constant 0 : i32
    %c0_i32_1 = arith.constant 0 : i32
    return %arg0, %c0_i32, %c0_i32_0 : i32, i32, i32
  }
  func.func @transform_2(%arg0: i32) -> (i32, i32, i32) {
    %c0_i32 = arith.constant 0 : i32
    %c0_i32_0 = arith.constant 0 : i32
    %c0_i32_1 = arith.constant 0 : i32
    %c0_i32_2 = arith.constant 0 : i32
    return %c0_i32, %c0_i32_0, %c0_i32_1 : i32, i32, i32
  }
  func.func @transform_3(%arg0: i32) -> (i32, i32) {
    %c0_i32 = arith.constant 0 : i32
    %c0_i32_0 = arith.constant 0 : i32
    %c0_i32_1 = arith.constant 0 : i32
    return %c0_i32, %c0_i32_0 : i32, i32
  }
  func.func @transform_4(%arg0: i32) -> (i32, i32) {
    %c0_i32 = arith.constant 0 : i32
    %c0_i32_0 = arith.constant 0 : i32
    %c0_i32_1 = arith.constant 0 : i32
    return %c0_i32, %c0_i32_0 : i32, i32
  }
  func.func @transform_5(%arg0: i32) -> (i32, i32, i32) {
    %c0_i32 = arith.constant 0 : i32
    %c0_i32_0 = arith.constant 0 : i32
    %c0_i32_1 = arith.constant 0 : i32
    %c0_i32_2 = arith.constant 0 : i32
    return %c0_i32, %c0_i32_0, %c0_i32_1 : i32, i32, i32
  }
  func.func @transform_6(%arg0: i32) -> (i32, i32, i32) {
    %c0_i32 = arith.constant 0 : i32
    %c0_i32_0 = arith.constant 0 : i32
    %c0_i32_1 = arith.constant 0 : i32
    %c0_i32_2 = arith.constant 0 : i32
    return %c0_i32, %c0_i32_0, %c0_i32_1 : i32, i32, i32
  }
  func.func @transform_7(%arg0: i32) -> (i32, i32, i32) {
    %c0_i32 = arith.constant 0 : i32
    %c0_i32_0 = arith.constant 0 : i32
    %c0_i32_1 = arith.constant 0 : i32
    return %arg0, %c0_i32, %c0_i32_0 : i32, i32, i32
  }
}

</mosaic_0001>

<llo_original>
// kernel: tpu_custom_call.1
$region0: #{tpu_custom_call.1}
  #allocation0 [shape = 'u32[]', space=smem, size = 0x4, offset = 0x4, fixed_abs, tag = 'smem constant byte address 0x4 - core index']
  #allocation1 [shape = 'u32[144,128]{1,0:T(1,128)}', space=vmem, size = 0x12000, scoped, tag = 'internal scratch']
  %s0 = inlined_call_operand.hbm [shape: f32[2,8,32], index: 0, kind: input, shape index: {}]
  %s1 = inlined_call_operand.hbm [shape: f32[2,1,8], index: 1, kind: input, shape index: {}]
  %s2 = inlined_call_operand.vmem [shape: bf16[5,32,32], index: 2, kind: input, shape index: {}]
  %s3 = inlined_call_operand.hbm [shape: bf16[32,128], index: 3, kind: input, shape index: {}]
  %s4 = inlined_call_operand.vmem [shape: bf16[128,32], index: 4, kind: input, shape index: {}]
  %s5 = inlined_call_operand.hbm [shape: f32[12,1,32], index: 5, kind: input, shape index: {}]
  %s6 = inlined_call_operand.vmem [shape: f32[3,1,128], index: 6, kind: input, shape index: {}]
  %s7 = inlined_call_operand.hbm [shape: f32[2,8,32], index: 7, kind: output, shape index: {}]
  %s8 = sld [smem:[#allocation0]]
  $region77: #{tpu_custom_call.1} parent=0
    _
  %s10 = ssub.s32 1, %s8
  %s11 = scalar_select 0, %s10, %s8
  $region1: #{tpu_custom_call.1} parent=0
    #allocation2 [shape = 'u8[8192]{0}', space=vmem, size = 0x2000, scoped, tag = 'input window, operand 0']
    #allocation3 [shape = 's32[2]{0}', space=sflag, size = 0x8, scoped, tag = 'scoped memory for tpu_custom_call.1']
    #allocation4 [shape = 's32[2]{0}', space=sflag, size = 0x8, scoped, tag = 'scoped memory for tpu_custom_call.1']
    #allocation5 [shape = 'u8[1024]{0}', space=vmem, size = 0x400, scoped, tag = 'input window, operand 1']
    #allocation6 [shape = 's32[2]{0}', space=sflag, size = 0x8, scoped, tag = 'scoped memory for tpu_custom_call.1']
    #allocation7 [shape = 'u8[8192]{0}', space=vmem, size = 0x2000, scoped, tag = 'input window, operand 3, single buffered']
    #allocation8 [shape = 'u8[6144]{0}', space=vmem, size = 0x1800, scoped, tag = 'input window, operand 5, single buffered']
    #allocation9 [shape = 's32[1]{0}', space=sflag, size = 0x4, scoped, tag = 'scoped memory for tpu_custom_call.1']
    #allocation10 [shape = 'u8[8192]{0}', space=vmem, size = 0x2000, scoped, tag = 'output window, operand 0']
    %12 = vsyncpa [#allocation3], 0
    %s13 = scalar_lea.sflag [#allocation3], 1
    %14 = vsyncpa %s13, 0
    %15 = vsyncpa [#allocation6], 0
    %s16 = scalar_lea.sflag [#allocation6], 1
    %17 = vsyncpa %s16, 0
    %18 = vsyncpa [#allocation9], 0
    %19 = vsyncpa [#allocation4], 0
    %s20 = scalar_lea.sflag [#allocation4], 1
    %21 = vsyncpa %s20, 0
    loop: start=0, step=1, limit=4
    $region2: #{tpu_custom_call.1} parent=1 // loop_pre_header
      _
    $region3: #{tpu_custom_call.1} parent=1 // loop_header
      %s23 = sphi 0, %s27
      %p24 = scmp.ge.s32.totalorder %s23, 4
      %s33 = sphi 0, %s35
      %s36 = sphi 0, %s33
      %s37 = sphi 0, %s36
      %s53 = sphi 0, %s37
      %s59 = sphi 0, %s61
      %s62 = sphi 0, %s59
      %s63 = sphi 0, %s62
      %s79 = sphi 0, %s63
      %s83 = sphi 0, %s83
      %s85 = sphi 0, %s83
      %s86 = sphi 0, %s85
      %s100 = sphi 0, %s86
      %s104 = sphi 0, %s104
      %s106 = sphi 0, %s104
      %s107 = sphi 0, %s106
      %s121 = sphi 0, %s107
      %s125 = sphi 0, %s125
      %s127 = sphi 0, %s125
      %s128 = sphi 0, %s127
      %s142 = sphi 0, %s128
      %s146 = sphi 0, %s146
      %s148 = sphi 0, %s146
      %s149 = sphi 0, %s148
      %s163 = sphi 0, %s149
      %s167 = sphi 0, %s167
      %s169 = sphi 0, %s167
      %s170 = sphi 0, %s169
      %s184 = sphi 0, %s170
      %s190 = sphi 0, %s192
      %s193 = sphi 0, %s190
      %s194 = sphi 0, %s193
      %s210 = sphi 0, %s194
    $region4: #{tpu_custom_call.1} parent=1 // loop_header_branch
      %26 = sbr.rel (%p24) target = $region8
    $region5: #{tpu_custom_call.1} parent=1 // loop_body
      %s28 = ssub.s32 %s23, 1
      %s29 = ssub.s32 %s23, 2
      %s30 = sadd.s32 %s23, 1
      %s31 = ssub.s32 %s23, %s30
      %p32 = scmp.eq.s32.totalorder %s31, 0
      %s34 = sadd.s32 %s33, 1
      %s35 = scalar_select %p32, %s33, %s34
      %p38 = pneg %p32
      %p39 = scmp.eq.s32.totalorder %s23, 1
      %p40 = por %p38, %p39
      %p41 = scmp.ne.s32.totalorder %s33, %s36
      %p42 = scmp.eq.s32.totalorder %s23, 0
      %p43 = por %p41, %p42
      %p44 = scmp.ne.s32.totalorder %s33, %s36
      %p45 = scmp.eq.s32.totalorder %s28, 1
      %p46 = por %p44, %p45
      %p47 = scmp.ne.s32.totalorder %s36, %s37
      %p48 = scmp.eq.s32.totalorder %s28, 0
      %p49 = por %p47, %p48
      %p50 = scmp.ne.s32.totalorder %s36, %s37
      %p51 = scmp.eq.s32.totalorder %s29, 1
      %p52 = por %p50, %p51
      %p54 = scmp.ne.s32.totalorder %s37, %s53
      %p55 = scmp.eq.s32.totalorder %s29, 0
      %p56 = por %p54, %p55
      %s57 = ssub.s32 %s23, %s30
      %p58 = scmp.eq.s32.totalorder %s57, 0
      %s60 = sadd.s32 %s59, 1
      %s61 = scalar_select %p58, %s59, %s60
      %p64 = pneg %p58
      %p65 = scmp.eq.s32.totalorder %s23, 1
      %p66 = por %p64, %p65
      %p67 = scmp.ne.s32.totalorder %s59, %s62
      %p68 = scmp.eq.s32.totalorder %s23, 0
      %p69 = por %p67, %p68
      %p70 = scmp.ne.s32.totalorder %s59, %s62
      %p71 = scmp.eq.s32.totalorder %s28, 1
      %p72 = por %p70, %p71
      %p73 = scmp.ne.s32.totalorder %s62, %s63
      %p74 = scmp.eq.s32.totalorder %s28, 0
      %p75 = por %p73, %p74
      %p76 = scmp.ne.s32.totalorder %s62, %s63
      %p77 = scmp.eq.s32.totalorder %s29, 1
      %p78 = por %p76, %p77
      %p80 = scmp.ne.s32.totalorder %s63, %s79
      %p81 = scmp.eq.s32.totalorder %s29, 0
      %p82 = por %p80, %p81
      %s84 = sadd.s32 %s83, 1
      %p87 = scmp.eq.s32.totalorder %s23, 1
      %p88 = scmp.ne.s32.totalorder %s83, %s85
      %p89 = scmp.eq.s32.totalorder %s23, 0
      %p90 = por %p88, %p89
      %p91 = scmp.ne.s32.totalorder %s83, %s85
      %p92 = scmp.eq.s32.totalorder %s28, 1
      %p93 = por %p91, %p92
      %p94 = scmp.ne.s32.totalorder %s85, %s86
      %p95 = scmp.eq.s32.totalorder %s28, 0
      %p96 = por %p94, %p95
      %p97 = scmp.ne.s32.totalorder %s85, %s86
      %p98 = scmp.eq.s32.totalorder %s29, 1
      %p99 = por %p97, %p98
      %p101 = scmp.ne.s32.totalorder %s86, %s100
      %p102 = scmp.eq.s32.totalorder %s29, 0
      %p103 = por %p101, %p102
      %s105 = sadd.s32 %s104, 1
      %p108 = scmp.eq.s32.totalorder %s23, 1
      %p109 = scmp.ne.s32.totalorder %s104, %s106
      %p110 = scmp.eq.s32.totalorder %s23, 0
      %p111 = por %p109, %p110
      %p112 = scmp.ne.s32.totalorder %s104, %s106
      %p113 = scmp.eq.s32.totalorder %s28, 1
      %p114 = por %p112, %p113
      %p115 = scmp.ne.s32.totalorder %s106, %s107
      %p116 = scmp.eq.s32.totalorder %s28, 0
      %p117 = por %p115, %p116
      %p118 = scmp.ne.s32.totalorder %s106, %s107
      %p119 = scmp.eq.s32.totalorder %s29, 1
      %p120 = por %p118, %p119
      %p122 = scmp.ne.s32.totalorder %s107, %s121
      %p123 = scmp.eq.s32.totalorder %s29, 0
      %p124 = por %p122, %p123
      %s126 = sadd.s32 %s125, 1
      %p129 = scmp.eq.s32.totalorder %s23, 1
      %p130 = scmp.ne.s32.totalorder %s125, %s127
      %p131 = scmp.eq.s32.totalorder %s23, 0
      %p132 = por %p130, %p131
      %p133 = scmp.ne.s32.totalorder %s125, %s127
      %p134 = scmp.eq.s32.totalorder %s28, 1
      %p135 = por %p133, %p134
      %p136 = scmp.ne.s32.totalorder %s127, %s128
      %p137 = scmp.eq.s32.totalorder %s28, 0
      %p138 = por %p136, %p137
      %p139 = scmp.ne.s32.totalorder %s127, %s128
      %p140 = scmp.eq.s32.totalorder %s29, 1
      %p141 = por %p139, %p140
      %p143 = scmp.ne.s32.totalorder %s128, %s142
      %p144 = scmp.eq.s32.totalorder %s29, 0
      %p145 = por %p143, %p144
      %s147 = sadd.s32 %s146, 1
      %p150 = scmp.eq.s32.totalorder %s23, 1
      %p151 = scmp.ne.s32.totalorder %s146, %s148
      %p152 = scmp.eq.s32.totalorder %s23, 0
      %p153 = por %p151, %p152
      %p154 = scmp.ne.s32.totalorder %s146, %s148
      %p155 = scmp.eq.s32.totalorder %s28, 1
      %p156 = por %p154, %p155
      %p157 = scmp.ne.s32.totalorder %s148, %s149
      %p158 = scmp.eq.s32.totalorder %s28, 0
      %p159 = por %p157, %p158
      %p160 = scmp.ne.s32.totalorder %s148, %s149
      %p161 = scmp.eq.s32.totalorder %s29, 1
      %p162 = por %p160, %p161
      %p164 = scmp.ne.s32.totalorder %s149, %s163
      %p165 = scmp.eq.s32.totalorder %s29, 0
      %p166 = por %p164, %p165
      %s168 = sadd.s32 %s167, 1
      %p171 = scmp.eq.s32.totalorder %s23, 1
      %p172 = scmp.ne.s32.totalorder %s167, %s169
      %p173 = scmp.eq.s32.totalorder %s23, 0
      %p174 = por %p172, %p173
      %p175 = scmp.ne.s32.totalorder %s167, %s169
      %p176 = scmp.eq.s32.totalorder %s28, 1
      %p177 = por %p175, %p176
      %p178 = scmp.ne.s32.totalorder %s169, %s170
      %p179 = scmp.eq.s32.totalorder %s28, 0
      %p180 = por %p178, %p179
      %p181 = scmp.ne.s32.totalorder %s169, %s170
      %p182 = scmp.eq.s32.totalorder %s29, 1
      %p183 = por %p181, %p182
      %p185 = scmp.ne.s32.totalorder %s170, %s184
      %p186 = scmp.eq.s32.totalorder %s29, 0
      %p187 = por %p185, %p186
      %s188 = ssub.s32 %s23, %s30
      %p189 = scmp.eq.s32.totalorder %s188, 0
      %s191 = sadd.s32 %s190, 1
      %s192 = scalar_select %p189, %s190, %s191
      %p195 = pneg %p189
      %p196 = scmp.eq.s32.totalorder %s23, 1
      %p197 = por %p195, %p196
      %p198 = scmp.ne.s32.totalorder %s190, %s193
      %p199 = scmp.eq.s32.totalorder %s23, 0
      %p200 = por %p198, %p199
      %p201 = scmp.ne.s32.totalorder %s190, %s193
      %p202 = scmp.eq.s32.totalorder %s28, 1
      %p203 = por %p201, %p202
      %p204 = scmp.ne.s32.totalorder %s193, %s194
      %p205 = scmp.eq.s32.totalorder %s28, 0
      %p206 = por %p204, %p205
      %p207 = scmp.ne.s32.totalorder %s193, %s194
      %p208 = scmp.eq.s32.totalorder %s29, 1
      %p209 = por %p207, %p208
      %p211 = scmp.ne.s32.totalorder %s194, %s210
      %p212 = scmp.eq.s32.totalorder %s29, 0
      %p213 = por %p211, %p212
      %p214 = scmp.le.s32.totalorder 1, %s23
      %p215 = scmp.lt.s32.totalorder %s23, 3
      %p216 = pnand %p214, %p215
      %p217 = pneg %p216
      // Predicated region
      $region9: #{tpu_custom_call.1} parent=5 // pred_check
        _
      $region10: #{tpu_custom_call.1} parent=5 // pred_check_branch
        %219 = sbr.rel (%p216) target = $region12
      $region11: #{tpu_custom_call.1} parent=5 // pred_region
        %s220 = ssub.s32 %s23, 1
        // Predicated region
        $region13: #{tpu_custom_call.1} parent=11 // pred_check
          %p221 = pneg %p96
        $region14: #{tpu_custom_call.1} parent=11 // pred_check_branch
          %223 = sbr.rel (%p221) target = $region16
        $region15: #{tpu_custom_call.1} parent=11 // pred_region
          _
        $region16: #{tpu_custom_call.1} parent=11 // pred_fallthru
          _
        // Predicated region
        $region17: #{tpu_custom_call.1} parent=11 // pred_check
          %p224 = pneg %p117
        $region18: #{tpu_custom_call.1} parent=11 // pred_check_branch
          %226 = sbr.rel (%p224) target = $region20
        $region19: #{tpu_custom_call.1} parent=11 // pred_region
          %s228 = ssub.s32 256, 256
          %229 = vsyncadd [#allocation6], %s228
          %s230 = sshll.u32 [#allocation7], 4
          %s231 = int_to_ptr.vmem [resolvable:$true] %s230
          %236 = dma.hbm_to_vmem [thread:$0]  %s3, 256, %s231, [#allocation6], 64, 64, 4
        $region20: #{tpu_custom_call.1} parent=11 // pred_fallthru
          _
        // Predicated region
        $region21: #{tpu_custom_call.1} parent=11 // pred_check
          %p237 = pneg %p138
        $region22: #{tpu_custom_call.1} parent=11 // pred_check_branch
          %239 = sbr.rel (%p237) target = $region24
        $region23: #{tpu_custom_call.1} parent=11 // pred_region
          _
        $region24: #{tpu_custom_call.1} parent=11 // pred_fallthru
          _
        // Predicated region
        $region25: #{tpu_custom_call.1} parent=11 // pred_check
          %p240 = pneg %p159
        $region26: #{tpu_custom_call.1} parent=11 // pred_check_branch
          %242 = sbr.rel (%p240) target = $region28
        $region27: #{tpu_custom_call.1} parent=11 // pred_region
          %s244 = ssub.s32 192, 192
          %245 = vsyncadd [#allocation9], %s244
          %s246 = sshll.u32 [#allocation8], 4
          %s247 = int_to_ptr.vmem [resolvable:$true] %s246
          %252 = dma.hbm_to_vmem [thread:$0]  %s5, 192, %s247, [#allocation9], 16, 16, 1
        $region28: #{tpu_custom_call.1} parent=11 // pred_fallthru
          _
        // Predicated region
        $region29: #{tpu_custom_call.1} parent=11 // pred_check
          %p253 = pneg %p180
        $region30: #{tpu_custom_call.1} parent=11 // pred_check_branch
          %255 = sbr.rel (%p253) target = $region32
        $region31: #{tpu_custom_call.1} parent=11 // pred_region
          _
        $region32: #{tpu_custom_call.1} parent=11 // pred_fallthru
          _
      $region12: #{tpu_custom_call.1} parent=5 // pred_fallthru
        _
      %p256 = scmp.lt.s32.totalorder %s23, 2
      // Predicated region
      $region33: #{tpu_custom_call.1} parent=5 // pred_check
        %p257 = pneg %p256
      $region34: #{tpu_custom_call.1} parent=5 // pred_check_branch
        %259 = sbr.rel (%p257) target = $region36
      $region35: #{tpu_custom_call.1} parent=5 // pred_region
        // Predicated region
        $region37: #{tpu_custom_call.1} parent=35 // pred_check
          %p260 = pneg %p43
        $region38: #{tpu_custom_call.1} parent=35 // pred_check_branch
          %262 = sbr.rel (%p260) target = $region40
        $region39: #{tpu_custom_call.1} parent=35 // pred_region
          %s263 = sand.u32 %s33, 1
          %s264 = scalar_lea.sflag [#allocation3], %s263
          %s265 = sand.u32 %s33, 1
          %s266 = smul.addr %s265, 8
          %s267 = scalar_lea.vmem [#allocation2], %s266
          %s269 = ssub.s32 128, 128
          %270 = vsyncadd %s264, %s269
          %s271 = smul.addr %s23, 128
          %s272 = scalar_lea.hbm %s0, %s271
          %s274 = sshll.u32 %s267, 4
          %s275 = int_to_ptr.vmem [resolvable:$true] %s274
          %277 = dma.hbm_to_vmem [thread:$0]  %s272, 128, %s275, %s264
        $region40: #{tpu_custom_call.1} parent=35 // pred_fallthru
          _
        // Predicated region
        $region41: #{tpu_custom_call.1} parent=35 // pred_check
          %p278 = pneg %p69
        $region42: #{tpu_custom_call.1} parent=35 // pred_check_branch
          %280 = sbr.rel (%p278) target = $region44
        $region43: #{tpu_custom_call.1} parent=35 // pred_region
          %s281 = sand.u32 %s23, 1
          %s282 = scalar_lea.sflag [#allocation6], %s281
          %s283 = sand.u32 %s59, 1
          %s284 = scalar_lea.vmem [#allocation5], %s283
          %s286 = ssub.s32 16, 16
          %287 = vsyncadd %s282, %s286
          %s288 = smul.addr %s23, 16
          %s289 = scalar_lea.hbm %s1, %s288
          %s291 = sshll.u32 %s284, 4
          %s292 = int_to_ptr.vmem [resolvable:$true] %s291
          %294 = dma.hbm_to_vmem [thread:$0]  %s289, 16, %s292, %s282
        $region44: #{tpu_custom_call.1} parent=35 // pred_fallthru
          _
      $region36: #{tpu_custom_call.1} parent=5 // pred_fallthru
        _
      %p295 = scmp.le.s32.totalorder 1, %s23
      %p296 = scmp.lt.s32.totalorder %s23, 3
      %p297 = pnand %p295, %p296
      %p298 = pneg %p297
      // Predicated region
      $region45: #{tpu_custom_call.1} parent=5 // pred_check
        _
      $region46: #{tpu_custom_call.1} parent=5 // pred_check_branch
        %300 = sbr.rel (%p297) target = $region48
      $region47: #{tpu_custom_call.1} parent=5 // pred_region
        %s301 = ssub.s32 %s23, 1
        %s302 = sand.u32 %s36, 1
        %s303 = scalar_lea.sflag [#allocation3], %s302
        %s304 = sand.u32 %s36, 1
        %s305 = smul.addr %s304, 8
        %s306 = scalar_lea.vmem [#allocation2], %s305
        // Predicated region
        $region49: #{tpu_custom_call.1} parent=47 // pred_check
          %p307 = pneg %p49
        $region50: #{tpu_custom_call.1} parent=47 // pred_check_branch
          %309 = sbr.rel (%p307) target = $region52
        $region51: #{tpu_custom_call.1} parent=47 // pred_region
          %310 = dma.done %s303, 128
        $region52: #{tpu_custom_call.1} parent=47 // pred_fallthru
          _
        %s311 = sand.u32 %s28, 1
        %s312 = scalar_lea.sflag [#allocation6], %s311
        %s313 = sand.u32 %s62, 1
        %s314 = scalar_lea.vmem [#allocation5], %s313
        // Predicated region
        $region53: #{tpu_custom_call.1} parent=47 // pred_check
          %p315 = pneg %p75
        $region54: #{tpu_custom_call.1} parent=47 // pred_check_branch
          %317 = sbr.rel (%p315) target = $region56
        $region55: #{tpu_custom_call.1} parent=47 // pred_region
          %318 = dma.done %s312, 16
        $region56: #{tpu_custom_call.1} parent=47 // pred_fallthru
          _
        // Predicated region
        $region57: #{tpu_custom_call.1} parent=47 // pred_check
          %p319 = pneg %p117
        $region58: #{tpu_custom_call.1} parent=47 // pred_check_branch
          %321 = sbr.rel (%p319) target = $region60
        $region59: #{tpu_custom_call.1} parent=47 // pred_region
          %322 = dma.done [#allocation6], 256
        $region60: #{tpu_custom_call.1} parent=47 // pred_fallthru
          _
        // Predicated region
        $region61: #{tpu_custom_call.1} parent=47 // pred_check
          %p323 = pneg %p159
        $region62: #{tpu_custom_call.1} parent=47 // pred_check_branch
          %325 = sbr.rel (%p323) target = $region64
        $region63: #{tpu_custom_call.1} parent=47 // pred_region
          %326 = dma.done [#allocation9], 192
        $region64: #{tpu_custom_call.1} parent=47 // pred_fallthru
          _
        %s327 = sand.u32 %s36, 1
        %s328 = scalar_lea.sflag [#allocation3], %s327
        %s329 = sand.u32 %s36, 1
        %s330 = smul.addr %s329, 8
        %s331 = scalar_lea.vmem [#allocation2], %s330
        %p332 = pneg %p49
        %p333 = pneg %p46
        %s334 = sand.u32 %s28, 1
        %s335 = scalar_lea.sflag [#allocation6], %s334
        %s336 = sand.u32 %s62, 1
        %s337 = scalar_lea.vmem [#allocation5], %s336
        %p338 = pneg %p75
        %p339 = pneg %p72
        %p340 = pneg %p96
        %p341 = pneg %p93
        %p342 = pneg %p117
        %p343 = pneg %p114
        %p344 = pneg %p138
        %p345 = pneg %p135
        %p346 = pneg %p159
        %p347 = pneg %p156
        %p348 = pneg %p180
        %p349 = pneg %p177
        %p350 = pneg %p206
        %p351 = pneg %p203
        %s352 = sand.u32 %s193, 1
        %s353 = scalar_lea.sflag [#allocation4], %s352
        %s354 = sand.u32 %s193, 1
        %s355 = smul.addr %s354, 8
        %s356 = scalar_lea.vmem [#allocation10], %s355
        %v358 = vld [vmem:[%s306] sm:$0xff]
        %v359 = vld [vmem:[%s314] sm:$0x1]
        %v360 = vld [vmem:[#allocation8] sm:$0x1]
        %s361 = scalar_lea.vmem [#allocation8], 1
        %v362 = vld [vmem:[%s361] sm:$0x1]
        %s363 = scalar_lea.vmem [#allocation8], 2
        %v364 = vld [vmem:[%s363] sm:$0x1]
        %s365 = scalar_lea.vmem [#allocation8], 3
        %v366 = vld [vmem:[%s365] sm:$0x1]
        %s367 = scalar_lea.vmem [#allocation8], 4
        %v368 = vld [vmem:[%s367] sm:$0x1]
        %s369 = scalar_lea.vmem [#allocation8], 5
        %v370 = vld [vmem:[%s369] sm:$0x1]
        %s371 = scalar_lea.vmem [#allocation8], 6
        %v372 = vld [vmem:[%s371] sm:$0x1]
        %s373 = scalar_lea.vmem [#allocation8], 7
        %v374 = vld [vmem:[%s373] sm:$0x1]
        %s375 = scalar_lea.vmem [#allocation8], 8
        %v376 = vld [vmem:[%s375] sm:$0x1]
        %s377 = scalar_lea.vmem [#allocation8], 9
        %v378 = vld [vmem:[%s377] sm:$0x1]
        %s379 = scalar_lea.vmem [#allocation8], 10
        %v380 = vld [vmem:[%s379] sm:$0x1]
        %s381 = scalar_lea.vmem [#allocation8], 11
        %v382 = vld [vmem:[%s381] sm:$0x1]
        %v383 = vld [vmem:[%s6] sm:$0x1]
        %s384 = scalar_lea.vmem %s6, 1
        %v385 = vld [vmem:[%s384] sm:$0x1]
        %s386 = scalar_lea.vmem %s6, 2
        %v387 = vld [vmem:[%s386] sm:$0x1]
        %vm388 = vcmask 261120
        %v389 = vsel %vm388, %v358, 0.0
        %390 = vadd.xlane.f32.xlu0 %v389
        %v391 = vpop.xlane.xlu0 %390
        %v392 = vrcp.pop 32.0
        %v393 = vmul.f32 %v391, %v392
        %v394 = vsub.f32 %v358, %v393
        %v395 = vmul.f32 %v394, %v394
        %v396 = vsel %vm388, %v395, 0.0
        %397 = vadd.xlane.f32.xlu0 %v396
        %v398 = vpop.xlane.xlu0 %397
        %v399 = vmul.f32 %v398, %v392
        %v400 = vadd.f32 %v399, 1e-05
        %v401 = vrsqrt.pop %v400
        %v402 = vmul.f32 %v394, %v401
        %v404 = vlaneseq
        %v405 = vshrl.u32 %v404, 7
        %v406 = vsub.s32 0, %v405
        %v407 = vrot.slane %v360, %v406
        %v409 = vmul.f32 %v402, %v407
        %v411 = vlaneseq
        %v412 = vshrl.u32 %v411, 7
        %v413 = vsub.s32 0, %v412
        %v414 = vrot.slane %v362, %v413
        %v416 = vadd.f32 %v409, %v414
        %v417 = vpack.c.bf16 %v416, %v416
        %v418 = vld [vmem:[%s2] sm:$0xf]
        %v419 = vld [vmem:[%s2 + $0x4] sm:$0xf]
        %v420 = vld [vmem:[%s2 + $0x8] sm:$0xf]
        %v421 = vld [vmem:[%s2 + $0xc] sm:$0xf]
        %v423 = vlaneseq
        %v424 = vshrl.u32 %v423, 7
        %v425 = vsub.s32 0, %v424
        %v426 = vrot.slane %v378, %v425
        %v432 = vunpack.c.l.b16 %v418
        %v433 = vunpack.c.l.b16 %v419
        %v434 = vunpack.c.l.b16 %v420
        %v435 = vunpack.c.l.b16 %v421
        %v436 = vpack.c.b16 %v433, %v432
        %v437 = vpack.c.b16 %v435, %v434
        %v441 = vsel %vm388, %v417, 0
        %443 = vmatprep.subr.bf16.mxu0 0
        %444 = vmatpush1.bf16.msra.mxu0 0
        %445 = vmatprep.subr.bf16.mxu0 0
        %446 = vmatpush1.bf16.msra.mxu0 0
        %447 = vmatprep.subr.bf16.mxu0 0
        %448 = vmatpush1.bf16.msra.mxu0 0
        %449 = vmatprep.subr.bf16.mxu0 0
        %450 = vmatpush1.bf16.msra.mxu0 0
        %451 = vmatprep.subr.bf16.mxu0 0
        %452 = vmatpush1.bf16.msra.mxu0 0
        %453 = vmatprep.subr.bf16.mxu0 0
        %454 = vmatpush1.bf16.msra.mxu0 0
        %455 = vmatprep.subr.bf16.mxu0 0
        %456 = vmatpush1.bf16.msra.mxu0 %v437
        %457 = vmatprep.subr.bf16.mxu0 0
        %458 = vmatpush1.bf16.msra.mxu0 %v436
        %459 = vmatprep.subr.bf16.mxu0 0
        %460 = vmatpush2.bf16.msra.mxu0 0
        %461 = vmatprep.subr.bf16.mxu0 0
        %462 = vmatpush2.bf16.msra.mxu0 0
        %463 = vmatprep.subr.bf16.mxu0 0
        %464 = vmatpush2.bf16.msra.mxu0 0
        %465 = vmatprep.subr.bf16.mxu0 0
        %466 = vmatpush2.bf16.msra.mxu0 0
        %467 = vmatprep.subr.bf16.mxu0 0
        %468 = vmatpush2.bf16.msra.mxu0 0
        %469 = vmatprep.subr.bf16.mxu0 0
        %470 = vmatpush2.bf16.msra.mxu0 0
        %471 = vmatprep.subr.bf16.mxu0 0
        %472 = vmatpush2.bf16.msra.mxu0 0
        %473 = vmatprep.subr.bf16.mxu0 0
        %474 = vmatpush2.bf16.msra.mxu0 0
        %475 = vmatprep.mubr.bf16.mxu0 0
        %476 = vmatmul.mubr.bf16.gmra.mxu0 %v441
        %v477 = vpop.f32.mrf.mxu0
        %v478 = vadd.f32 %v426, %v477
        %v479 = vpop.f32.mrf.mxu0
        %v480 = vpop.f32.mrf.mxu0
        %v481 = vpop.f32.mrf.mxu0
        %482 = vdwg.mxu0
        %s483 = scalar_lea.vmem %s2, 16
        %v484 = vld [vmem:[%s483] sm:$0xf]
        %v485 = vld [vmem:[%s483 + $0x4] sm:$0xf]
        %v486 = vld [vmem:[%s483 + $0x8] sm:$0xf]
        %v487 = vld [vmem:[%s483 + $0xc] sm:$0xf]
        %v489 = vlaneseq
        %v490 = vshrl.u32 %v489, 7
        %v491 = vsub.s32 0, %v490
        %v492 = vrot.slane %v380, %v491
        %v498 = vunpack.c.l.b16 %v484
        %v499 = vunpack.c.l.b16 %v485
        %v500 = vunpack.c.l.b16 %v486
        %v501 = vunpack.c.l.b16 %v487
        %v502 = vpack.c.b16 %v499, %v498
        %v503 = vpack.c.b16 %v501, %v500
        %506 = vmatprep.subr.bf16.mxu0 0
        %507 = vmatpush1.bf16.msra.mxu0 0
        %508 = vmatprep.subr.bf16.mxu0 0
        %509 = vmatpush1.bf16.msra.mxu0 0
        %510 = vmatprep.subr.bf16.mxu0 0
        %511 = vmatpush1.bf16.msra.mxu0 0
        %512 = vmatprep.subr.bf16.mxu0 0
        %513 = vmatpush1.bf16.msra.mxu0 0
        %514 = vmatprep.subr.bf16.mxu0 0
        %515 = vmatpush1.bf16.msra.mxu0 0
        %516 = vmatprep.subr.bf16.mxu0 0
        %517 = vmatpush1.bf16.msra.mxu0 0
        %518 = vmatprep.subr.bf16.mxu0 0
        %519 = vmatpush1.bf16.msra.mxu0 %v503
        %520 = vmatprep.subr.bf16.mxu0 0
        %521 = vmatpush1.bf16.msra.mxu0 %v502
        %522 = vmatprep.subr.bf16.mxu0 0
        %523 = vmatpush2.bf16.msra.mxu0 0
        %524 = vmatprep.subr.bf16.mxu0 0
        %525 = vmatpush2.bf16.msra.mxu0 0
        %526 = vmatprep.subr.bf16.mxu0 0
        %527 = vmatpush2.bf16.msra.mxu0 0
        %528 = vmatprep.subr.bf16.mxu0 0
        %529 = vmatpush2.bf16.msra.mxu0 0
        %530 = vmatprep.subr.bf16.mxu0 0
        %531 = vmatpush2.bf16.msra.mxu0 0
        %532 = vmatprep.subr.bf16.mxu0 0
        %533 = vmatpush2.bf16.msra.mxu0 0
        %534 = vmatprep.subr.bf16.mxu0 0
        %535 = vmatpush2.bf16.msra.mxu0 0
        %536 = vmatprep.subr.bf16.mxu0 0
        %537 = vmatpush2.bf16.msra.mxu0 0
        %538 = vmatprep.mubr.bf16.mxu0 0
        %539 = vmatmul.mubr.bf16.gmra.mxu0 %v441
        %v540 = vpop.f32.mrf.mxu0
        %v541 = vadd.f32 %v492, %v540
        %v542 = vpop.f32.mrf.mxu0
        %v543 = vpop.f32.mrf.mxu0
        %v544 = vpop.f32.mrf.mxu0
        %545 = vdwg.mxu0
        %s546 = scalar_lea.vmem %s2, 32
        %v547 = vld [vmem:[%s546] sm:$0xf]
        %v548 = vld [vmem:[%s546 + $0x4] sm:$0xf]
        %v549 = vld [vmem:[%s546 + $0x8] sm:$0xf]
        %v550 = vld [vmem:[%s546 + $0xc] sm:$0xf]
        %v552 = vlaneseq
        %v553 = vshrl.u32 %v552, 7
        %v554 = vsub.s32 0, %v553
        %v555 = vrot.slane %v382, %v554
        %v561 = vunpack.c.l.b16 %v547
        %v562 = vunpack.c.l.b16 %v548
        %v563 = vunpack.c.l.b16 %v549
        %v564 = vunpack.c.l.b16 %v550
        %v565 = vpack.c.b16 %v562, %v561
        %v566 = vpack.c.b16 %v564, %v563
        %569 = vmatprep.subr.bf16.mxu0 0
        %570 = vmatpush1.bf16.msra.mxu0 0
        %571 = vmatprep.subr.bf16.mxu0 0
        %572 = vmatpush1.bf16.msra.mxu0 0
        %573 = vmatprep.subr.bf16.mxu0 0
        %574 = vmatpush1.bf16.msra.mxu0 0
        %575 = vmatprep.subr.bf16.mxu0 0
        %576 = vmatpush1.bf16.msra.mxu0 0
        %577 = vmatprep.subr.bf16.mxu0 0
        %578 = vmatpush1.bf16.msra.mxu0 0
        %579 = vmatprep.subr.bf16.mxu0 0
        %580 = vmatpush1.bf16.msra.mxu0 0
        %581 = vmatprep.subr.bf16.mxu0 0
        %582 = vmatpush1.bf16.msra.mxu0 %v566
        %583 = vmatprep.subr.bf16.mxu0 0
        %584 = vmatpush1.bf16.msra.mxu0 %v565
        %585 = vmatprep.subr.bf16.mxu0 0
        %586 = vmatpush2.bf16.msra.mxu0 0
        %587 = vmatprep.subr.bf16.mxu0 0
        %588 = vmatpush2.bf16.msra.mxu0 0
        %589 = vmatprep.subr.bf16.mxu0 0
        %590 = vmatpush2.bf16.msra.mxu0 0
        %591 = vmatprep.subr.bf16.mxu0 0
        %592 = vmatpush2.bf16.msra.mxu0 0
        %593 = vmatprep.subr.bf16.mxu0 0
        %594 = vmatpush2.bf16.msra.mxu0 0
        %595 = vmatprep.subr.bf16.mxu0 0
        %596 = vmatpush2.bf16.msra.mxu0 0
        %597 = vmatprep.subr.bf16.mxu0 0
        %598 = vmatpush2.bf16.msra.mxu0 0
        %599 = vmatprep.subr.bf16.mxu0 0
        %600 = vmatpush2.bf16.msra.mxu0 0
        %601 = vmatprep.mubr.bf16.mxu0 0
        %602 = vmatmul.mubr.bf16.gmra.mxu0 %v441
        %v603 = vpop.f32.mrf.mxu0
        %v604 = vadd.f32 %v555, %v603
        %v605 = vpop.f32.mrf.mxu0
        %v606 = vpop.f32.mrf.mxu0
        %v607 = vpop.f32.mrf.mxu0
        %608 = vdwg.mxu0
        %610 = vrot.lane.b32.xlu0 %v478, 120
        %v611 = vpop.permute.xlu0 %610
        %613 = vrot.lane.b32.xlu0 %v478, 112
        %v614 = vpop.permute.xlu0 %613
        %616 = vrot.lane.b32.xlu0 %v478, 104
        %v617 = vpop.permute.xlu0 %616
        %v619 = vpack.c.bf16 %v478, %v478
        %v620 = vpack.c.bf16 %v611, %v611
        %v621 = vpack.c.bf16 %v614, %v614
        %v622 = vpack.c.bf16 %v617, %v617
        %624 = vrot.lane.b32.xlu0 %v541, 120
        %v625 = vpop.permute.xlu0 %624
        %627 = vrot.lane.b32.xlu0 %v541, 112
        %v628 = vpop.permute.xlu0 %627
        %630 = vrot.lane.b32.xlu0 %v541, 104
        %v631 = vpop.permute.xlu0 %630
        %v633 = vpack.c.bf16 %v541, %v541
        %v634 = vpack.c.bf16 %v625, %v625
        %v635 = vpack.c.bf16 %v628, %v628
        %v636 = vpack.c.bf16 %v631, %v631
        %638 = vrot.lane.b32.xlu0 %v604, 120
        %v639 = vpop.permute.xlu0 %638
        %641 = vrot.lane.b32.xlu0 %v604, 112
        %v642 = vpop.permute.xlu0 %641
        %644 = vrot.lane.b32.xlu0 %v604, 104
        %v645 = vpop.permute.xlu0 %644
        %v647 = vpack.c.bf16 %v604, %v604
        %v648 = vpack.c.bf16 %v639, %v639
        %v649 = vpack.c.bf16 %v642, %v642
        %v650 = vpack.c.bf16 %v645, %v645
        %vm651 = vcmask 64512
        %v653 = vsel %vm651, %v619, 0
        %v656 = vsel %vm651, %v633, 0
        %658 = vmatprep.subr.bf16.mxu0 0
        %659 = vmatpush1.bf16.xpose.msra.mxu0 0
        %660 = vmatprep.subr.bf16.mxu0 0
        %661 = vmatpush1.bf16.xpose.msra.mxu0 0
        %662 = vmatprep.subr.bf16.mxu0 0
        %663 = vmatpush1.bf16.xpose.msra.mxu0 0
        %664 = vmatprep.subr.bf16.mxu0 0
        %665 = vmatpush1.bf16.xpose.msra.mxu0 0
        %666 = vmatprep.subr.bf16.mxu0 0
        %667 = vmatpush1.bf16.xpose.msra.mxu0 0
        %668 = vmatprep.subr.bf16.mxu0 0
        %669 = vmatpush1.bf16.xpose.msra.mxu0 0
        %670 = vmatprep.subr.bf16.mxu0 0
        %671 = vmatpush1.bf16.xpose.msra.mxu0 0
        %672 = vmatprep.subr.bf16.mxu0 0
        %673 = vmatpush1.bf16.xpose.msra.mxu0 %v656
        %674 = vmatprep.subr.bf16.mxu0 0
        %675 = vmatpush2.bf16.xpose.msra.mxu0 0
        %676 = vmatprep.subr.bf16.mxu0 0
        %677 = vmatpush2.bf16.xpose.msra.mxu0 0
        %678 = vmatprep.subr.bf16.mxu0 0
        %679 = vmatpush2.bf16.xpose.msra.mxu0 0
        %680 = vmatprep.subr.bf16.mxu0 0
        %681 = vmatpush2.bf16.xpose.msra.mxu0 0
        %682 = vmatprep.subr.bf16.mxu0 0
        %683 = vmatpush2.bf16.xpose.msra.mxu0 0
        %684 = vmatprep.subr.bf16.mxu0 0
        %685 = vmatpush2.bf16.xpose.msra.mxu0 0
        %686 = vmatprep.subr.bf16.mxu0 0
        %687 = vmatpush2.bf16.xpose.msra.mxu0 0
        %688 = vmatprep.subr.bf16.mxu0 0
        %689 = vmatpush2.bf16.xpose.msra.mxu0 0
        %690 = vmatprep.mubr.bf16.mxu0 0
        %691 = vmatmul.mubr.bf16.gmra.mxu0 %v653
        %v692 = vpop.f32.mrf.mxu0
        %v693 = vadd.f32 0.0, %v692
        %v694 = vpop.f32.mrf.mxu0
        %v695 = vpop.f32.mrf.mxu0
        %v696 = vpop.f32.mrf.mxu0
        %697 = vdwg.mxu0
        %v699 = vsel %vm651, %v620, 0
        %v702 = vsel %vm651, %v634, 0
        %704 = vmatprep.subr.bf16.mxu0 0
        %705 = vmatpush1.bf16.xpose.msra.mxu0 0
        %706 = vmatprep.subr.bf16.mxu0 0
        %707 = vmatpush1.bf16.xpose.msra.mxu0 0
        %708 = vmatprep.subr.bf16.mxu0 0
        %709 = vmatpush1.bf16.xpose.msra.mxu0 0
        %710 = vmatprep.subr.bf16.mxu0 0
        %711 = vmatpush1.bf16.xpose.msra.mxu0 0
        %712 = vmatprep.subr.bf16.mxu0 0
        %713 = vmatpush1.bf16.xpose.msra.mxu0 0
        %714 = vmatprep.subr.bf16.mxu0 0
        %715 = vmatpush1.bf16.xpose.msra.mxu0 0
        %716 = vmatprep.subr.bf16.mxu0 0
        %717 = vmatpush1.bf16.xpose.msra.mxu0 0
        %718 = vmatprep.subr.bf16.mxu0 0
        %719 = vmatpush1.bf16.xpose.msra.mxu0 %v702
        %720 = vmatprep.subr.bf16.mxu0 0
        %721 = vmatpush2.bf16.xpose.msra.mxu0 0
        %722 = vmatprep.subr.bf16.mxu0 0
        %723 = vmatpush2.bf16.xpose.msra.mxu0 0
        %724 = vmatprep.subr.bf16.mxu0 0
        %725 = vmatpush2.bf16.xpose.msra.mxu0 0
        %726 = vmatprep.subr.bf16.mxu0 0
        %727 = vmatpush2.bf16.xpose.msra.mxu0 0
        %728 = vmatprep.subr.bf16.mxu0 0
        %729 = vmatpush2.bf16.xpose.msra.mxu0 0
        %730 = vmatprep.subr.bf16.mxu0 0
        %731 = vmatpush2.bf16.xpose.msra.mxu0 0
        %732 = vmatprep.subr.bf16.mxu0 0
        %733 = vmatpush2.bf16.xpose.msra.mxu0 0
        %734 = vmatprep.subr.bf16.mxu0 0
        %735 = vmatpush2.bf16.xpose.msra.mxu0 0
        %736 = vmatprep.mubr.bf16.mxu0 0
        %737 = vmatmul.mubr.bf16.gmra.mxu0 %v699
        %v738 = vpop.f32.mrf.mxu0
        %v739 = vadd.f32 0.0, %v738
        %v740 = vpop.f32.mrf.mxu0
        %v741 = vpop.f32.mrf.mxu0
        %v742 = vpop.f32.mrf.mxu0
        %743 = vdwg.mxu0
        %v745 = vsel %vm651, %v621, 0
        %v748 = vsel %vm651, %v635, 0
        %750 = vmatprep.subr.bf16.mxu0 0
        %751 = vmatpush1.bf16.xpose.msra.mxu0 0
        %752 = vmatprep.subr.bf16.mxu0 0
        %753 = vmatpush1.bf16.xpose.msra.mxu0 0
        %754 = vmatprep.subr.bf16.mxu0 0
        %755 = vmatpush1.bf16.xpose.msra.mxu0 0
        %756 = vmatprep.subr.bf16.mxu0 0
        %757 = vmatpush1.bf16.xpose.msra.mxu0 0
        %758 = vmatprep.subr.bf16.mxu0 0
        %759 = vmatpush1.bf16.xpose.msra.mxu0 0
        %760 = vmatprep.subr.bf16.mxu0 0
        %761 = vmatpush1.bf16.xpose.msra.mxu0 0
        %762 = vmatprep.subr.bf16.mxu0 0
        %763 = vmatpush1.bf16.xpose.msra.mxu0 0
        %764 = vmatprep.subr.bf16.mxu0 0
        %765 = vmatpush1.bf16.xpose.msra.mxu0 %v748
        %766 = vmatprep.subr.bf16.mxu0 0
        %767 = vmatpush2.bf16.xpose.msra.mxu0 0
        %768 = vmatprep.subr.bf16.mxu0 0
        %769 = vmatpush2.bf16.xpose.msra.mxu0 0
        %770 = vmatprep.subr.bf16.mxu0 0
        %771 = vmatpush2.bf16.xpose.msra.mxu0 0
        %772 = vmatprep.subr.bf16.mxu0 0
        %773 = vmatpush2.bf16.xpose.msra.mxu0 0
        %774 = vmatprep.subr.bf16.mxu0 0
        %775 = vmatpush2.bf16.xpose.msra.mxu0 0
        %776 = vmatprep.subr.bf16.mxu0 0
        %777 = vmatpush2.bf16.xpose.msra.mxu0 0
        %778 = vmatprep.subr.bf16.mxu0 0
        %779 = vmatpush2.bf16.xpose.msra.mxu0 0
        %780 = vmatprep.subr.bf16.mxu0 0
        %781 = vmatpush2.bf16.xpose.msra.mxu0 0
        %782 = vmatprep.mubr.bf16.mxu0 0
        %783 = vmatmul.mubr.bf16.gmra.mxu0 %v745
        %v784 = vpop.f32.mrf.mxu0
        %v785 = vadd.f32 0.0, %v784
        %v786 = vpop.f32.mrf.mxu0
        %v787 = vpop.f32.mrf.mxu0
        %v788 = vpop.f32.mrf.mxu0
        %789 = vdwg.mxu0
        %v791 = vsel %vm651, %v622, 0
        %v794 = vsel %vm651, %v636, 0
        %796 = vmatprep.subr.bf16.mxu0 0
        %797 = vmatpush1.bf16.xpose.msra.mxu0 0
        %798 = vmatprep.subr.bf16.mxu0 0
        %799 = vmatpush1.bf16.xpose.msra.mxu0 0
        %800 = vmatprep.subr.bf16.mxu0 0
        %801 = vmatpush1.bf16.xpose.msra.mxu0 0
        %802 = vmatprep.subr.bf16.mxu0 0
        %803 = vmatpush1.bf16.xpose.msra.mxu0 0
        %804 = vmatprep.subr.bf16.mxu0 0
        %805 = vmatpush1.bf16.xpose.msra.mxu0 0
        %806 = vmatprep.subr.bf16.mxu0 0
        %807 = vmatpush1.bf16.xpose.msra.mxu0 0
        %808 = vmatprep.subr.bf16.mxu0 0
        %809 = vmatpush1.bf16.xpose.msra.mxu0 0
        %810 = vmatprep.subr.bf16.mxu0 0
        %811 = vmatpush1.bf16.xpose.msra.mxu0 %v794
        %812 = vmatprep.subr.bf16.mxu0 0
        %813 = vmatpush2.bf16.xpose.msra.mxu0 0
        %814 = vmatprep.subr.bf16.mxu0 0
        %815 = vmatpush2.bf16.xpose.msra.mxu0 0
        %816 = vmatprep.subr.bf16.mxu0 0
        %817 = vmatpush2.bf16.xpose.msra.mxu0 0
        %818 = vmatprep.subr.bf16.mxu0 0
        %819 = vmatpush2.bf16.xpose.msra.mxu0 0
        %820 = vmatprep.subr.bf16.mxu0 0
        %821 = vmatpush2.bf16.xpose.msra.mxu0 0
        %822 = vmatprep.subr.bf16.mxu0 0
        %823 = vmatpush2.bf16.xpose.msra.mxu0 0
        %824 = vmatprep.subr.bf16.mxu0 0
        %825 = vmatpush2.bf16.xpose.msra.mxu0 0
        %826 = vmatprep.subr.bf16.mxu0 0
        %827 = vmatpush2.bf16.xpose.msra.mxu0 0
        %828 = vmatprep.mubr.bf16.mxu0 0
        %829 = vmatmul.mubr.bf16.gmra.mxu0 %v791
        %v830 = vpop.f32.mrf.mxu0
        %v831 = vadd.f32 0.0, %v830
        %v832 = vpop.f32.mrf.mxu0
        %v833 = vpop.f32.mrf.mxu0
        %v834 = vpop.f32.mrf.mxu0
        %835 = vdwg.mxu0
        %v837 = vlaneseq
        %v838 = vshrl.u32 %v837, 7
        %v839 = vsub.s32 0, %v838
        %v840 = vrot.slane %v359, %v839
        %v842 = vadd.f32 %v693, %v840
        %v843 = vadd.f32 %v739, %v840
        %v844 = vadd.f32 %v785, %v840
        %v845 = vadd.f32 %v831, %v840
        %v846 = vsel %vm651, %v842, -inf
        %847 = vmax.xlane.f32.xlu0 %v846
        %v848 = vpop.xlane.xlu0 %847
        %v849 = vsel %vm651, %v843, -inf
        %850 = vmax.xlane.f32.xlu0 %v849
        %v851 = vpop.xlane.xlu0 %850
        %v852 = vsel %vm651, %v844, -inf
        %853 = vmax.xlane.f32.xlu0 %v852
        %v854 = vpop.xlane.xlu0 %853
        %v855 = vsel %vm651, %v845, -inf
        %856 = vmax.xlane.f32.xlu0 %v855
        %v857 = vpop.xlane.xlu0 %856
        %v858 = vsub.f32 %v842, %v848
        %v859 = vsub.f32 %v843, %v851
        %v860 = vsub.f32 %v844, %v854
        %v861 = vsub.f32 %v845, %v857
        %v862 = vmul.f32 %v858, 1.442695
        %v863 = vpow.pop %v862
        %v864 = vmul.f32 %v859, 1.442695
        %v865 = vpow.pop %v864
        %v866 = vmul.f32 %v860, 1.442695
        %v867 = vpow.pop %v866
        %v868 = vmul.f32 %v861, 1.442695
        %v869 = vpow.pop %v868
        %v870 = vsel %vm651, %v863, 0.0
        %871 = vadd.xlane.f32.xlu0 %v870
        %v872 = vpop.xlane.xlu0 %871
        %v873 = vsel %vm651, %v865, 0.0
        %874 = vadd.xlane.f32.xlu0 %v873
        %v875 = vpop.xlane.xlu0 %874
        %v876 = vsel %vm651, %v867, 0.0
        %877 = vadd.xlane.f32.xlu0 %v876
        %v878 = vpop.xlane.xlu0 %877
        %v879 = vsel %vm651, %v869, 0.0
        %880 = vadd.xlane.f32.xlu0 %v879
        %v881 = vpop.xlane.xlu0 %880
        %v882 = vrcp.pop %v872
        %v883 = vrcp.pop %v875
        %v884 = vrcp.pop %v878
        %v885 = vrcp.pop %v881
        %v886 = vmul.f32 %v863, %v882
        %v887 = vmul.f32 %v865, %v883
        %v888 = vmul.f32 %v867, %v884
        %v889 = vmul.f32 %v869, %v885
        %v890 = vpack.c.bf16 %v886, %v886
        %v891 = vpack.c.bf16 %v887, %v887
        %v892 = vpack.c.bf16 %v888, %v888
        %v893 = vpack.c.bf16 %v889, %v889
        %v895 = vsel %vm651, %v890, 0
        %vm897 = vcmask 1043456
        %v899 = vsel %vm897, %v647, 0
        %901 = vmatprep.subr.bf16.mxu0 0
        %902 = vmatpush1.bf16.msra.mxu0 0
        %903 = vmatprep.subr.bf16.mxu0 0
        %904 = vmatpush1.bf16.msra.mxu0 0
        %905 = vmatprep.subr.bf16.mxu0 0
        %906 = vmatpush1.bf16.msra.mxu0 0
        %907 = vmatprep.subr.bf16.mxu0 0
        %908 = vmatpush1.bf16.msra.mxu0 0
        %909 = vmatprep.subr.bf16.mxu0 0
        %910 = vmatpush1.bf16.msra.mxu0 0
        %911 = vmatprep.subr.bf16.mxu0 0
        %912 = vmatpush1.bf16.msra.mxu0 0
        %913 = vmatprep.subr.bf16.mxu0 0
        %914 = vmatpush1.bf16.msra.mxu0 0
        %915 = vmatprep.subr.bf16.mxu0 0
        %916 = vmatpush1.bf16.msra.mxu0 %v899
        %917 = vmatprep.subr.bf16.mxu0 0
        %918 = vmatpush2.bf16.msra.mxu0 0
        %919 = vmatprep.subr.bf16.mxu0 0
        %920 = vmatpush2.bf16.msra.mxu0 0
        %921 = vmatprep.subr.bf16.mxu0 0
        %922 = vmatpush2.bf16.msra.mxu0 0
        %923 = vmatprep.subr.bf16.mxu0 0
        %924 = vmatpush2.bf16.msra.mxu0 0
        %925 = vmatprep.subr.bf16.mxu0 0
        %926 = vmatpush2.bf16.msra.mxu0 0
        %927 = vmatprep.subr.bf16.mxu0 0
        %928 = vmatpush2.bf16.msra.mxu0 0
        %929 = vmatprep.subr.bf16.mxu0 0
        %930 = vmatpush2.bf16.msra.mxu0 0
        %931 = vmatprep.subr.bf16.mxu0 0
        %932 = vmatpush2.bf16.msra.mxu0 0
        %933 = vmatprep.mubr.bf16.mxu0 0
        %934 = vmatmul.mubr.bf16.gmra.mxu0 %v895
        %v935 = vpop.f32.mrf.mxu0
        %v936 = vadd.f32 0.0, %v935
        %v937 = vpop.f32.mrf.mxu0
        %v938 = vpop.f32.mrf.mxu0
        %v939 = vpop.f32.mrf.mxu0
        %940 = vdwg.mxu0
        %v942 = vsel %vm651, %v891, 0
        %v945 = vsel %vm897, %v648, 0
        %947 = vmatprep.subr.bf16.mxu0 0
        %948 = vmatpush1.bf16.msra.mxu0 0
        %949 = vmatprep.subr.bf16.mxu0 0
        %950 = vmatpush1.bf16.msra.mxu0 0
        %951 = vmatprep.subr.bf16.mxu0 0
        %952 = vmatpush1.bf16.msra.mxu0 0
        %953 = vmatprep.subr.bf16.mxu0 0
        %954 = vmatpush1.bf16.msra.mxu0 0
        %955 = vmatprep.subr.bf16.mxu0 0
        %956 = vmatpush1.bf16.msra.mxu0 0
        %957 = vmatprep.subr.bf16.mxu0 0
        %958 = vmatpush1.bf16.msra.mxu0 0
        %959 = vmatprep.subr.bf16.mxu0 0
        %960 = vmatpush1.bf16.msra.mxu0 0
        %961 = vmatprep.subr.bf16.mxu0 0
        %962 = vmatpush1.bf16.msra.mxu0 %v945
        %963 = vmatprep.subr.bf16.mxu0 0
        %964 = vmatpush2.bf16.msra.mxu0 0
        %965 = vmatprep.subr.bf16.mxu0 0
        %966 = vmatpush2.bf16.msra.mxu0 0
        %967 = vmatprep.subr.bf16.mxu0 0
        %968 = vmatpush2.bf16.msra.mxu0 0
        %969 = vmatprep.subr.bf16.mxu0 0
        %970 = vmatpush2.bf16.msra.mxu0 0
        %971 = vmatprep.subr.bf16.mxu0 0
        %972 = vmatpush2.bf16.msra.mxu0 0
        %973 = vmatprep.subr.bf16.mxu0 0
        %974 = vmatpush2.bf16.msra.mxu0 0
        %975 = vmatprep.subr.bf16.mxu0 0
        %976 = vmatpush2.bf16.msra.mxu0 0
        %977 = vmatprep.subr.bf16.mxu0 0
        %978 = vmatpush2.bf16.msra.mxu0 0
        %979 = vmatprep.mubr.bf16.mxu0 0
        %980 = vmatmul.mubr.bf16.gmra.mxu0 %v942
        %v981 = vpop.f32.mrf.mxu0
        %v982 = vadd.f32 0.0, %v981
        %v983 = vpop.f32.mrf.mxu0
        %v984 = vpop.f32.mrf.mxu0
        %v985 = vpop.f32.mrf.mxu0
        %986 = vdwg.mxu0
        %v988 = vsel %vm651, %v892, 0
        %v991 = vsel %vm897, %v649, 0
        %993 = vmatprep.subr.bf16.mxu0 0
        %994 = vmatpush1.bf16.msra.mxu0 0
        %995 = vmatprep.subr.bf16.mxu0 0
        %996 = vmatpush1.bf16.msra.mxu0 0
        %997 = vmatprep.subr.bf16.mxu0 0
        %998 = vmatpush1.bf16.msra.mxu0 0
        %999 = vmatprep.subr.bf16.mxu0 0
        %1000 = vmatpush1.bf16.msra.mxu0 0
        %1001 = vmatprep.subr.bf16.mxu0 0
        %1002 = vmatpush1.bf16.msra.mxu0 0
        %1003 = vmatprep.subr.bf16.mxu0 0
        %1004 = vmatpush1.bf16.msra.mxu0 0
        %1005 = vmatprep.subr.bf16.mxu0 0
        %1006 = vmatpush1.bf16.msra.mxu0 0
        %1007 = vmatprep.subr.bf16.mxu0 0
        %1008 = vmatpush1.bf16.msra.mxu0 %v991
        %1009 = vmatprep.subr.bf16.mxu0 0
        %1010 = vmatpush2.bf16.msra.mxu0 0
        %1011 = vmatprep.subr.bf16.mxu0 0
        %1012 = vmatpush2.bf16.msra.mxu0 0
        %1013 = vmatprep.subr.bf16.mxu0 0
        %1014 = vmatpush2.bf16.msra.mxu0 0
        %1015 = vmatprep.subr.bf16.mxu0 0
        %1016 = vmatpush2.bf16.msra.mxu0 0
        %1017 = vmatprep.subr.bf16.mxu0 0
        %1018 = vmatpush2.bf16.msra.mxu0 0
        %1019 = vmatprep.subr.bf16.mxu0 0
        %1020 = vmatpush2.bf16.msra.mxu0 0
        %1021 = vmatprep.subr.bf16.mxu0 0
        %1022 = vmatpush2.bf16.msra.mxu0 0
        %1023 = vmatprep.subr.bf16.mxu0 0
        %1024 = vmatpush2.bf16.msra.mxu0 0
        %1025 = vmatprep.mubr.bf16.mxu0 0
        %1026 = vmatmul.mubr.bf16.gmra.mxu0 %v988
        %v1027 = vpop.f32.mrf.mxu0
        %v1028 = vadd.f32 0.0, %v1027
        %v1029 = vpop.f32.mrf.mxu0
        %v1030 = vpop.f32.mrf.mxu0
        %v1031 = vpop.f32.mrf.mxu0
        %1032 = vdwg.mxu0
        %v1034 = vsel %vm651, %v893, 0
        %v1037 = vsel %vm897, %v650, 0
        %1039 = vmatprep.subr.bf16.mxu0 0
        %1040 = vmatpush1.bf16.msra.mxu0 0
        %1041 = vmatprep.subr.bf16.mxu0 0
        %1042 = vmatpush1.bf16.msra.mxu0 0
        %1043 = vmatprep.subr.bf16.mxu0 0
        %1044 = vmatpush1.bf16.msra.mxu0 0
        %1045 = vmatprep.subr.bf16.mxu0 0
        %1046 = vmatpush1.bf16.msra.mxu0 0
        %1047 = vmatprep.subr.bf16.mxu0 0
        %1048 = vmatpush1.bf16.msra.mxu0 0
        %1049 = vmatprep.subr.bf16.mxu0 0
        %1050 = vmatpush1.bf16.msra.mxu0 0
        %1051 = vmatprep.subr.bf16.mxu0 0
        %1052 = vmatpush1.bf16.msra.mxu0 0
        %1053 = vmatprep.subr.bf16.mxu0 0
        %1054 = vmatpush1.bf16.msra.mxu0 %v1037
        %1055 = vmatprep.subr.bf16.mxu0 0
        %1056 = vmatpush2.bf16.msra.mxu0 0
        %1057 = vmatprep.subr.bf16.mxu0 0
        %1058 = vmatpush2.bf16.msra.mxu0 0
        %1059 = vmatprep.subr.bf16.mxu0 0
        %1060 = vmatpush2.bf16.msra.mxu0 0
        %1061 = vmatprep.subr.bf16.mxu0 0
        %1062 = vmatpush2.bf16.msra.mxu0 0
        %1063 = vmatprep.subr.bf16.mxu0 0
        %1064 = vmatpush2.bf16.msra.mxu0 0
        %1065 = vmatprep.subr.bf16.mxu0 0
        %1066 = vmatpush2.bf16.msra.mxu0 0
        %1067 = vmatprep.subr.bf16.mxu0 0
        %1068 = vmatpush2.bf16.msra.mxu0 0
        %1069 = vmatprep.subr.bf16.mxu0 0
        %1070 = vmatpush2.bf16.msra.mxu0 0
        %1071 = vmatprep.mubr.bf16.mxu0 0
        %1072 = vmatmul.mubr.bf16.gmra.mxu0 %v1034
        %v1073 = vpop.f32.mrf.mxu0
        %v1074 = vadd.f32 0.0, %v1073
        %v1075 = vpop.f32.mrf.mxu0
        %v1076 = vpop.f32.mrf.mxu0
        %v1077 = vpop.f32.mrf.mxu0
        %1078 = vdwg.mxu0
        %1080 = vrot.lane.b32.xlu0 %v982, 8
        %v1081 = vpop.permute.xlu0 %1080
        %1084 = vrot.lane.b32.xlu0 %v1028, 16
        %v1085 = vpop.permute.xlu0 %1084
        %1088 = vrot.lane.b32.xlu0 %v1074, 24
        %v1089 = vpop.permute.xlu0 %1088
        %v1091 = vsel %vm651, %v936, %v1081
        %vm1092 = vcmask 130048
        %v1093 = vsel %vm1092, %v1091, %v1085
        %vm1094 = vcmask 195584
        %v1095 = vsel %vm1094, %v1093, %v1089
        %v1096 = vpack.c.bf16 %v1095, %v1095
        %s1097 = scalar_lea.vmem %s2, 48
        %v1098 = vld [vmem:[%s1097] sm:$0xf]
        %v1099 = vld [vmem:[%s1097 + $0x4] sm:$0xf]
        %v1100 = vld [vmem:[%s1097 + $0x8] sm:$0xf]
        %v1101 = vld [vmem:[%s1097 + $0xc] sm:$0xf]
        %v1103 = vlaneseq
        %v1104 = vshrl.u32 %v1103, 7
        %v1105 = vsub.s32 0, %v1104
        %v1106 = vrot.slane %v372, %v1105
        %v1112 = vunpack.c.l.b16 %v1098
        %v1113 = vunpack.c.l.b16 %v1099
        %v1114 = vunpack.c.l.b16 %v1100
        %v1115 = vunpack.c.l.b16 %v1101
        %v1116 = vpack.c.b16 %v1113, %v1112
        %v1117 = vpack.c.b16 %v1115, %v1114
        %v1121 = vsel %vm388, %v1096, 0
        %1123 = vmatprep.subr.bf16.mxu0 0
        %1124 = vmatpush1.bf16.msra.mxu0 0
        %1125 = vmatprep.subr.bf16.mxu0 0
        %1126 = vmatpush1.bf16.msra.mxu0 0
        %1127 = vmatprep.subr.bf16.mxu0 0
        %1128 = vmatpush1.bf16.msra.mxu0 0
        %1129 = vmatprep.subr.bf16.mxu0 0
        %1130 = vmatpush1.bf16.msra.mxu0 0
        %1131 = vmatprep.subr.bf16.mxu0 0
        %1132 = vmatpush1.bf16.msra.mxu0 0
        %1133 = vmatprep.subr.bf16.mxu0 0
        %1134 = vmatpush1.bf16.msra.mxu0 0
        %1135 = vmatprep.subr.bf16.mxu0 0
        %1136 = vmatpush1.bf16.msra.mxu0 %v1117
        %1137 = vmatprep.subr.bf16.mxu0 0
        %1138 = vmatpush1.bf16.msra.mxu0 %v1116
        %1139 = vmatprep.subr.bf16.mxu0 0
        %1140 = vmatpush2.bf16.msra.mxu0 0
        %1141 = vmatprep.subr.bf16.mxu0 0
        %1142 = vmatpush2.bf16.msra.mxu0 0
        %1143 = vmatprep.subr.bf16.mxu0 0
        %1144 = vmatpush2.bf16.msra.mxu0 0
        %1145 = vmatprep.subr.bf16.mxu0 0
        %1146 = vmatpush2.bf16.msra.mxu0 0
        %1147 = vmatprep.subr.bf16.mxu0 0
        %1148 = vmatpush2.bf16.msra.mxu0 0
        %1149 = vmatprep.subr.bf16.mxu0 0
        %1150 = vmatpush2.bf16.msra.mxu0 0
        %1151 = vmatprep.subr.bf16.mxu0 0
        %1152 = vmatpush2.bf16.msra.mxu0 0
        %1153 = vmatprep.subr.bf16.mxu0 0
        %1154 = vmatpush2.bf16.msra.mxu0 0
        %1155 = vmatprep.mubr.bf16.mxu0 0
        %1156 = vmatmul.mubr.bf16.gmra.mxu0 %v1121
        %v1157 = vpop.f32.mrf.mxu0
        %v1158 = vadd.f32 %v1106, %v1157
        %v1159 = vpop.f32.mrf.mxu0
        %v1160 = vpop.f32.mrf.mxu0
        %v1161 = vpop.f32.mrf.mxu0
        %1162 = vdwg.mxu0
        %v1163 = vadd.f32 %v358, %v1158
        %v1164 = vsel %vm388, %v1163, 0.0
        %1165 = vadd.xlane.f32.xlu0 %v1164
        %v1166 = vpop.xlane.xlu0 %1165
        %v1167 = vmul.f32 %v1166, %v392
        %v1168 = vsub.f32 %v1163, %v1167
        %v1169 = vmul.f32 %v1168, %v1168
        %v1170 = vsel %vm388, %v1169, 0.0
        %1171 = vadd.xlane.f32.xlu0 %v1170
        %v1172 = vpop.xlane.xlu0 %1171
        %v1173 = vmul.f32 %v1172, %v392
        %v1174 = vadd.f32 %v1173, 1e-05
        %v1175 = vrsqrt.pop %v1174
        %v1176 = vmul.f32 %v1168, %v1175
        %v1178 = vlaneseq
        %v1179 = vshrl.u32 %v1178, 7
        %v1180 = vsub.s32 0, %v1179
        %v1181 = vrot.slane %v364, %v1180
        %v1183 = vmul.f32 %v1176, %v1181
        %v1185 = vlaneseq
        %v1186 = vshrl.u32 %v1185, 7
        %v1187 = vsub.s32 0, %v1186
        %v1188 = vrot.slane %v366, %v1187
        %v1190 = vadd.f32 %v1183, %v1188
        %v1191 = vpack.c.bf16 %v1190, %v1190
        %s1192 = scalar_lea.vmem %s2, 64
        %v1193 = vld [vmem:[%s1192] sm:$0xf]
        %v1194 = vld [vmem:[%s1192 + $0x4] sm:$0xf]
        %v1195 = vld [vmem:[%s1192 + $0x8] sm:$0xf]
        %v1196 = vld [vmem:[%s1192 + $0xc] sm:$0xf]
        %v1198 = vlaneseq
        %v1199 = vshrl.u32 %v1198, 7
        %v1200 = vsub.s32 0, %v1199
        %v1201 = vrot.slane %v374, %v1200
        %v1207 = vunpack.c.l.b16 %v1193
        %v1208 = vunpack.c.l.b16 %v1194
        %v1209 = vunpack.c.l.b16 %v1195
        %v1210 = vunpack.c.l.b16 %v1196
        %v1211 = vpack.c.b16 %v1208, %v1207
        %v1212 = vpack.c.b16 %v1210, %v1209
        %v1216 = vsel %vm388, %v1191, 0
        %1218 = vmatprep.subr.bf16.mxu0 0
        %1219 = vmatpush1.bf16.msra.mxu0 0
        %1220 = vmatprep.subr.bf16.mxu0 0
        %1221 = vmatpush1.bf16.msra.mxu0 0
        %1222 = vmatprep.subr.bf16.mxu0 0
        %1223 = vmatpush1.bf16.msra.mxu0 0
        %1224 = vmatprep.subr.bf16.mxu0 0
        %1225 = vmatpush1.bf16.msra.mxu0 0
        %1226 = vmatprep.subr.bf16.mxu0 0
        %1227 = vmatpush1.bf16.msra.mxu0 0
        %1228 = vmatprep.subr.bf16.mxu0 0
        %1229 = vmatpush1.bf16.msra.mxu0 0
        %1230 = vmatprep.subr.bf16.mxu0 0
        %1231 = vmatpush1.bf16.msra.mxu0 %v1212
        %1232 = vmatprep.subr.bf16.mxu0 0
        %1233 = vmatpush1.bf16.msra.mxu0 %v1211
        %1234 = vmatprep.subr.bf16.mxu0 0
        %1235 = vmatpush2.bf16.msra.mxu0 0
        %1236 = vmatprep.subr.bf16.mxu0 0
        %1237 = vmatpush2.bf16.msra.mxu0 0
        %1238 = vmatprep.subr.bf16.mxu0 0
        %1239 = vmatpush2.bf16.msra.mxu0 0
        %1240 = vmatprep.subr.bf16.mxu0 0
        %1241 = vmatpush2.bf16.msra.mxu0 0
        %1242 = vmatprep.subr.bf16.mxu0 0
        %1243 = vmatpush2.bf16.msra.mxu0 0
        %1244 = vmatprep.subr.bf16.mxu0 0
        %1245 = vmatpush2.bf16.msra.mxu0 0
        %1246 = vmatprep.subr.bf16.mxu0 0
        %1247 = vmatpush2.bf16.msra.mxu0 0
        %1248 = vmatprep.subr.bf16.mxu0 0
        %1249 = vmatpush2.bf16.msra.mxu0 0
        %1250 = vmatprep.mubr.bf16.mxu0 0
        %1251 = vmatmul.mubr.bf16.gmra.mxu0 %v1216
        %v1252 = vpop.f32.mrf.mxu0
        %v1253 = vadd.f32 %v1201, %v1252
        %v1254 = vpop.f32.mrf.mxu0
        %v1255 = vpop.f32.mrf.mxu0
        %v1256 = vpop.f32.mrf.mxu0
        %1257 = vdwg.mxu0
        %v1258 = vsel %vm388, %v1253, 0.0
        %1259 = vadd.xlane.f32.xlu0 %v1258
        %v1260 = vpop.xlane.xlu0 %1259
        %v1261 = vmul.f32 %v1260, %v392
        %v1262 = vsub.f32 %v1253, %v1261
        %v1263 = vmul.f32 %v1262, %v1262
        %v1264 = vsel %vm388, %v1263, 0.0
        %1265 = vadd.xlane.f32.xlu0 %v1264
        %v1266 = vpop.xlane.xlu0 %1265
        %v1267 = vmul.f32 %v1266, %v392
        %v1268 = vadd.f32 %v1267, 1e-05
        %v1269 = vrsqrt.pop %v1268
        %v1270 = vmul.f32 %v1262, %v1269
        %v1272 = vlaneseq
        %v1273 = vshrl.u32 %v1272, 7
        %v1274 = vsub.s32 0, %v1273
        %v1275 = vrot.slane %v368, %v1274
        %v1277 = vmul.f32 %v1270, %v1275
        %v1279 = vlaneseq
        %v1280 = vshrl.u32 %v1279, 7
        %v1281 = vsub.s32 0, %v1280
        %v1282 = vrot.slane %v370, %v1281
        %v1284 = vadd.f32 %v1277, %v1282
        %v1285 = vmul.f32 %v1284, 0.5
        %v1286 = vmul.f32 %v1284, 0.044715
        %v1287 = vmul.f32 %v1286, %v1284
        %v1288 = vmul.f32 %v1287, %v1284
        %v1289 = vadd.f32 %v1284, %v1288
        %v1290 = vmul.f32 %v1289, 0.7978846
        %v1291 = vtanh.pop %v1290
        %v1292 = vadd.f32 %v1291, 1.0
        %v1293 = vmul.f32 %v1285, %v1292
        %v1294 = vpack.c.bf16 %v1293, %v1293
        %v1295 = vld [vmem:[#allocation7] sm:$0xf]
        %v1296 = vld [vmem:[#allocation7 + $0x4] sm:$0xf]
        %v1297 = vld [vmem:[#allocation7 + $0x8] sm:$0xf]
        %v1298 = vld [vmem:[#allocation7 + $0xc] sm:$0xf]
        %v1300 = vlaneseq
        %v1301 = vshrl.u32 %v1300, 7
        %v1302 = vsub.s32 0, %v1301
        %v1303 = vrot.slane %v383, %v1302
        %v1309 = vunpack.c.l.b16 %v1295
        %v1310 = vunpack.c.l.b16 %v1296
        %v1311 = vunpack.c.l.b16 %v1297
        %v1312 = vunpack.c.l.b16 %v1298
        %v1313 = vpack.c.b16 %v1310, %v1309
        %v1314 = vpack.c.b16 %v1312, %v1311
        %v1318 = vsel %vm388, %v1294, 0
        %1320 = vmatprep.subr.bf16.mxu0 0
        %1321 = vmatpush1.bf16.msra.mxu0 0
        %1322 = vmatprep.subr.bf16.mxu0 0
        %1323 = vmatpush1.bf16.msra.mxu0 0
        %1324 = vmatprep.subr.bf16.mxu0 0
        %1325 = vmatpush1.bf16.msra.mxu0 0
        %1326 = vmatprep.subr.bf16.mxu0 0
        %1327 = vmatpush1.bf16.msra.mxu0 0
        %1328 = vmatprep.subr.bf16.mxu0 0
        %1329 = vmatpush1.bf16.msra.mxu0 0
        %1330 = vmatprep.subr.bf16.mxu0 0
        %1331 = vmatpush1.bf16.msra.mxu0 0
        %1332 = vmatprep.subr.bf16.mxu0 0
        %1333 = vmatpush1.bf16.msra.mxu0 %v1314
        %1334 = vmatprep.subr.bf16.mxu0 0
        %1335 = vmatpush1.bf16.msra.mxu0 %v1313
        %1336 = vmatprep.subr.bf16.mxu0 0
        %1337 = vmatpush2.bf16.msra.mxu0 0
        %1338 = vmatprep.subr.bf16.mxu0 0
        %1339 = vmatpush2.bf16.msra.mxu0 0
        %1340 = vmatprep.subr.bf16.mxu0 0
        %1341 = vmatpush2.bf16.msra.mxu0 0
        %1342 = vmatprep.subr.bf16.mxu0 0
        %1343 = vmatpush2.bf16.msra.mxu0 0
        %1344 = vmatprep.subr.bf16.mxu0 0
        %1345 = vmatpush2.bf16.msra.mxu0 0
        %1346 = vmatprep.subr.bf16.mxu0 0
        %1347 = vmatpush2.bf16.msra.mxu0 0
        %1348 = vmatprep.subr.bf16.mxu0 0
        %1349 = vmatpush2.bf16.msra.mxu0 0
        %1350 = vmatprep.subr.bf16.mxu0 0
        %1351 = vmatpush2.bf16.msra.mxu0 0
        %1352 = vmatprep.mubr.bf16.mxu0 0
        %1353 = vmatmul.mubr.bf16.gmra.mxu0 %v1318
        %v1354 = vpop.f32.mrf.mxu0
        %v1355 = vadd.f32 %v1303, %v1354
        %v1356 = vpop.f32.mrf.mxu0
        %v1357 = vpop.f32.mrf.mxu0
        %v1358 = vpop.f32.mrf.mxu0
        %1359 = vdwg.mxu0
        %1360 = vadd.xlane.f32.xlu0 %v1355
        %v1361 = vpop.xlane.xlu0 %1360
        %v1362 = vrcp.pop 128.0
        %v1363 = vmul.f32 %v1361, %v1362
        %v1364 = vsub.f32 %v1355, %v1363
        %v1365 = vmul.f32 %v1364, %v1364
        %1366 = vadd.xlane.f32.xlu0 %v1365
        %v1367 = vpop.xlane.xlu0 %1366
        %v1368 = vmul.f32 %v1367, %v1362
        %v1369 = vadd.f32 %v1368, 1e-05
        %v1370 = vrsqrt.pop %v1369
        %v1371 = vmul.f32 %v1364, %v1370
        %v1373 = vlaneseq
        %v1374 = vshrl.u32 %v1373, 7
        %v1375 = vsub.s32 0, %v1374
        %v1376 = vrot.slane %v385, %v1375
        %v1378 = vmul.f32 %v1371, %v1376
        %v1380 = vlaneseq
        %v1381 = vshrl.u32 %v1380, 7
        %v1382 = vsub.s32 0, %v1381
        %v1383 = vrot.slane %v387, %v1382
        %v1385 = vadd.f32 %v1378, %v1383
        %v1386 = vmul.f32 %v1385, 0.5
        %v1387 = vmul.f32 %v1385, 0.044715
        %v1388 = vmul.f32 %v1387, %v1385
        %v1389 = vmul.f32 %v1388, %v1385
        %v1390 = vadd.f32 %v1385, %v1389
        %v1391 = vmul.f32 %v1390, 0.7978846
        %v1392 = vtanh.pop %v1391
        %v1393 = vadd.f32 %v1392, 1.0
        %v1394 = vmul.f32 %v1386, %v1393
        %v1395 = vpack.c.bf16 %v1394, %v1394
        %v1396 = vld [vmem:[%s4] sm:$0xf]
        %v1397 = vld [vmem:[%s4 + $0x4] sm:$0xf]
        %v1398 = vld [vmem:[%s4 + $0x8] sm:$0xf]
        %v1399 = vld [vmem:[%s4 + $0xc] sm:$0xf]
        %v1400 = vld [vmem:[%s4 + $0x10] sm:$0xf]
        %v1401 = vld [vmem:[%s4 + $0x14] sm:$0xf]
        %v1402 = vld [vmem:[%s4 + $0x18] sm:$0xf]
        %v1403 = vld [vmem:[%s4 + $0x1c] sm:$0xf]
        %v1404 = vld [vmem:[%s4 + $0x20] sm:$0xf]
        %v1405 = vld [vmem:[%s4 + $0x24] sm:$0xf]
        %v1406 = vld [vmem:[%s4 + $0x28] sm:$0xf]
        %v1407 = vld [vmem:[%s4 + $0x2c] sm:$0xf]
        %v1408 = vld [vmem:[%s4 + $0x30] sm:$0xf]
        %v1409 = vld [vmem:[%s4 + $0x34] sm:$0xf]
        %v1410 = vld [vmem:[%s4 + $0x38] sm:$0xf]
        %v1411 = vld [vmem:[%s4 + $0x3c] sm:$0xf]
        %v1413 = vlaneseq
        %v1414 = vshrl.u32 %v1413, 7
        %v1415 = vsub.s32 0, %v1414
        %v1416 = vrot.slane %v376, %v1415
        %v1434 = vunpack.c.l.b16 %v1396
        %v1435 = vunpack.c.l.b16 %v1397
        %v1436 = vunpack.c.l.b16 %v1398
        %v1437 = vunpack.c.l.b16 %v1399
        %v1438 = vunpack.c.l.b16 %v1400
        %v1439 = vunpack.c.l.b16 %v1401
        %v1440 = vunpack.c.l.b16 %v1402
        %v1441 = vunpack.c.l.b16 %v1403
        %v1442 = vunpack.c.l.b16 %v1404
        %v1443 = vunpack.c.l.b16 %v1405
        %v1444 = vunpack.c.l.b16 %v1406
        %v1445 = vunpack.c.l.b16 %v1407
        %v1446 = vunpack.c.l.b16 %v1408
        %v1447 = vunpack.c.l.b16 %v1409
        %v1448 = vunpack.c.l.b16 %v1410
        %v1449 = vunpack.c.l.b16 %v1411
        %v1450 = vpack.c.b16 %v1435, %v1434
        %v1451 = vpack.c.b16 %v1437, %v1436
        %v1452 = vpack.c.b16 %v1439, %v1438
        %v1453 = vpack.c.b16 %v1441, %v1440
        %v1454 = vpack.c.b16 %v1443, %v1442
        %v1455 = vpack.c.b16 %v1445, %v1444
        %v1456 = vpack.c.b16 %v1447, %v1446
        %v1457 = vpack.c.b16 %v1449, %v1448
        %1466 = vmatprep.subr.bf16.mxu0 0
        %1467 = vmatpush1.bf16.msra.mxu0 %v1457
        %1468 = vmatprep.subr.bf16.mxu0 0
        %1469 = vmatpush1.bf16.msra.mxu0 %v1456
        %1470 = vmatprep.subr.bf16.mxu0 0
        %1471 = vmatpush1.bf16.msra.mxu0 %v1455
        %1472 = vmatprep.subr.bf16.mxu0 0
        %1473 = vmatpush1.bf16.msra.mxu0 %v1454
        %1474 = vmatprep.subr.bf16.mxu0 0
        %1475 = vmatpush1.bf16.msra.mxu0 %v1453
        %1476 = vmatprep.subr.bf16.mxu0 0
        %1477 = vmatpush1.bf16.msra.mxu0 %v1452
        %1478 = vmatprep.subr.bf16.mxu0 0
        %1479 = vmatpush1.bf16.msra.mxu0 %v1451
        %1480 = vmatprep.subr.bf16.mxu0 0
        %1481 = vmatpush1.bf16.msra.mxu0 %v1450
        %1482 = vmatprep.subr.bf16.mxu0 0
        %1483 = vmatpush2.bf16.msra.mxu0 0
        %1484 = vmatprep.subr.bf16.mxu0 0
        %1485 = vmatpush2.bf16.msra.mxu0 0
        %1486 = vmatprep.subr.bf16.mxu0 0
        %1487 = vmatpush2.bf16.msra.mxu0 0
        %1488 = vmatprep.subr.bf16.mxu0 0
        %1489 = vmatpush2.bf16.msra.mxu0 0
        %1490 = vmatprep.subr.bf16.mxu0 0
        %1491 = vmatpush2.bf16.msra.mxu0 0
        %1492 = vmatprep.subr.bf16.mxu0 0
        %1493 = vmatpush2.bf16.msra.mxu0 0
        %1494 = vmatprep.subr.bf16.mxu0 0
        %1495 = vmatpush2.bf16.msra.mxu0 0
        %1496 = vmatprep.subr.bf16.mxu0 0
        %1497 = vmatpush2.bf16.msra.mxu0 0
        %1498 = vmatprep.mubr.bf16.mxu0 0
        %1499 = vmatmul.mubr.bf16.gmra.mxu0 %v1395
        %v1500 = vpop.f32.mrf.mxu0
        %v1501 = vadd.f32 %v1416, %v1500
        %v1502 = vpop.f32.mrf.mxu0
        %v1503 = vpop.f32.mrf.mxu0
        %v1504 = vpop.f32.mrf.mxu0
        %1505 = vdwg.mxu0
        %v1506 = vadd.f32 %v1163, %v1501
        %1507 = vst.msk [vmem:[%s356] sm:$0xff] %vm388, %v1506
        %s1508 = sand.u32 %s193, 1
        %s1509 = scalar_lea.sflag [#allocation4], %s1508
        %s1510 = sand.u32 %s193, 1
        %s1511 = smul.addr %s1510, 8
        %s1512 = scalar_lea.vmem [#allocation10], %s1511
        // Predicated region
        $region65: #{tpu_custom_call.1} parent=47 // pred_check
          %p1513 = pneg %p203
        $region66: #{tpu_custom_call.1} parent=47 // pred_check_branch
          %1515 = sbr.rel (%p1513) target = $region68
        $region67: #{tpu_custom_call.1} parent=47 // pred_region
          %s1517 = ssub.s32 128, 128
          %1518 = vsyncadd %s1509, %s1517
          %s1519 = smul.addr %s28, 128
          %s1520 = scalar_lea.hbm %s7, %s1519
          %s1522 = sshll.u32 %s1512, 4
          %s1523 = int_to_ptr.vmem [resolvable:$true] %s1522
          %1525 = dma.vmem_to_hbm [thread:$0]  %s1523, 128, %s1520, %s1509
        $region68: #{tpu_custom_call.1} parent=47 // pred_fallthru
          _
      $region48: #{tpu_custom_call.1} parent=5 // pred_fallthru
        _
      %p1526 = scmp.le.s32.totalorder 2, %s23
      // Predicated region
      $region69: #{tpu_custom_call.1} parent=5 // pred_check
        %p1527 = pneg %p1526
      $region70: #{tpu_custom_call.1} parent=5 // pred_check_branch
        %1529 = sbr.rel (%p1527) target = $region72
      $region71: #{tpu_custom_call.1} parent=5 // pred_region
        %s1530 = ssub.s32 %s23, 2
        // Predicated region
        $region73: #{tpu_custom_call.1} parent=71 // pred_check
          %p1531 = pneg %p209
        $region74: #{tpu_custom_call.1} parent=71 // pred_check_branch
          %1533 = sbr.rel (%p1531) target = $region76
        $region75: #{tpu_custom_call.1} parent=71 // pred_region
          %s1534 = sand.u32 %s194, 1
          %s1535 = scalar_lea.sflag [#allocation4], %s1534
          %s1536 = sand.u32 %s194, 1
          %s1537 = smul.addr %s1536, 8
          %s1538 = scalar_lea.vmem [#allocation10], %s1537
          %1539 = dma.done %s1535, 128
        $region76: #{tpu_custom_call.1} parent=71 // pred_fallthru
          _
      $region72: #{tpu_custom_call.1} parent=5 // pred_fallthru
        _
    $region6: #{tpu_custom_call.1} parent=1 // loop_footer
      %s27 = sadd.s32 1, %s23
    $region7: #{tpu_custom_call.1} parent=1 // loop_footer_branch
      %22 = sbr.rel target = $region3
    $region8: #{tpu_custom_call.1} parent=1 // loop_exit
      _
    %1540 = vsyncpa [#allocation3], 1
    %s1541 = scalar_lea.sflag [#allocation3], 1
    %1542 = vsyncpa %s1541, 1
    %1543 = vsyncpa [#allocation6], 1
    %s1544 = scalar_lea.sflag [#allocation6], 1
    %1545 = vsyncpa %s1544, 1
    %1546 = vsyncpa [#allocation9], 1
    %1547 = vsyncpa [#allocation4], 1
    %s1548 = scalar_lea.sflag [#allocation4], 1
    %1549 = vsyncpa %s1548, 1

</llo_original>
